<compile_context>
chip_gen: v6e
topology: v6e:2x2x1
jax: 0.10.0
libtpu: 0.0.40
codegen_flags: <defaults>
</compile_context>

<pallas_src>
import math

import jax
import jax.numpy as jnp
from jax.experimental import pallas as pl
from jax.experimental.pallas import tpu as pltpu  # noqa: F401  (TPU backend)

# ---- problem sizes (small, consistent with the module) ----
B = 2             # batch
SPE = 45          # spectral_size
KSIZE = 16        # conv kernel size
PAD = 1           # conv padding
C = 128           # conv out_channels
NUM_CLASSES = 16
LC = SPE + 2 * PAD - KSIZE + 1     # conv output length = 32
LP = LC // 2                       # avgpool output length = 16
F = C * LP                         # PyTorch flattened feature size = 2048
FW = LC * C                        # pre-pool feature width inside kernel = 4096
BN_EPS = 1e-5


# -------------------- Pallas kernel (whole forward) --------------------

def fused_forward_kernel(x_ref, wconv_ref, shift_ref, whead_ref, bias_ref,
                         out_ref):
    # x_ref:     (B, SPE)      input spectra (batch in sublanes)
    # wconv_ref: (SPE, LC*C)   Toeplitz conv weight, BN scale + zero-pad folded
    # shift_ref: (1, LC*C)     BN shift tiled over conv positions
    # whead_ref: (NC, LC*C)    linear weight with avgpool + NCL flatten folded
    # bias_ref:  (1, NC)       linear bias
    # out_ref:   (B, NC)
    #
    # Conv1d (padding already folded into the Toeplitz weight as zero taps)
    h = jnp.dot(x_ref[...], wconv_ref[...],
                preferred_element_type=jnp.float32)          # (B, LC*C)
    # BatchNorm (scale folded into wconv) + ReLU
    h = jnp.maximum(h + shift_ref[...], 0.0)
    # AvgPool1d + Flatten + Linear, all folded into the lane-dense head weight
    logits = jax.lax.dot_general(
        h, whead_ref[...],
        dimension_numbers=(((1,), (1,)), ((), ())),          # contract FW vs FW
        preferred_element_type=jnp.float32)                  # (B, NC)
    out_ref[...] = logits + bias_ref[...]


def forward(x, params):
    """x: [B, 1, spe, 1, 1] float32 -> logits [B, num_classes]."""
    b, ch, spe, h, w = x.shape
    assert h == 1 and w == 1 and ch == 1 and spe == SPE and b == B
    x2 = x.reshape(b, spe)                      # metadata-only reshape
    return pl.pallas_call(
        fused_forward_kernel,
        out_shape=jax.ShapeDtypeStruct((B, NUM_CLASSES), jnp.float32),
    )(x2, params["w_conv_toeplitz"], params["bn_shift_tiled"],
      params["w_head"], params["lin_b_1n"])


# -------------------- deterministic parameter init --------------------

def init_raw_params(key):
    """Parameters in their PyTorch-equivalent layout."""
    k_conv, k_lw, k_lb = jax.random.split(key, 3)

    # Conv1d weight: torch shape (C, 1, K); module overrides init with
    # normal(0, sqrt(2/(K*C))) in __init__.
    std = math.sqrt(2.0 / (KSIZE * C))
    conv_w = jax.random.normal(k_conv, (C, KSIZE), jnp.float32) * std

    # BatchNorm1d: gamma=1, beta=0, running_mean=0, running_var=1
    gamma = jnp.ones((C,), jnp.float32)
    beta = jnp.zeros((C,), jnp.float32)
    r_mean = jnp.zeros((C,), jnp.float32)
    r_var = jnp.ones((C,), jnp.float32)

    # LazyLinear(num_classes): torch weight (nc, F), bias (nc); uniform init
    bound = 1.0 / math.sqrt(F)
    lin_w = jax.random.uniform(k_lw, (NUM_CLASSES, F), jnp.float32,
                               -bound, bound)
    lin_b = jax.random.uniform(k_lb, (NUM_CLASSES,), jnp.float32,
                               -bound, bound)

    return dict(conv_w=conv_w, gamma=gamma, beta=beta, r_mean=r_mean,
                r_var=r_var, lin_w=lin_w, lin_b=lin_b)


def fold_params(raw):
    """One-time folding of conv/BN/pool/flatten/linear into kernel operands."""
    # TODO(synk): training-mode BN (batch statistics) not computed; inference
    #             running stats are folded into a per-channel scale/shift.
    bn_scale = raw["gamma"] / jnp.sqrt(raw["r_var"] + BN_EPS)        # (C,)
    bn_shift = raw["beta"] - raw["r_mean"] * bn_scale                # (C,)

    # BN scale folded into the conv weight; expand to a Toeplitz matrix so
    # that  conv_out[b, l*C + c] = (x2 @ W_conv)[b, l*C + c].
    w_kc = (raw["conv_w"] * bn_scale[:, None]).T                     # (K, C)
    j = jnp.arange(SPE)[:, None]                                     # x index
    l = jnp.arange(LC)[None, :]                                      # conv pos
    tap = j + PAD - l                                                # kernel tap
    valid = (tap >= 0) & (tap < KSIZE)
    tap_safe = jnp.clip(tap, 0, KSIZE - 1)
    w_conv = jnp.where(valid[:, :, None], w_kc[tap_safe], 0.0)       # (SPE,LC,C)
    w_conv = w_conv.reshape(SPE, FW)                                 # (45, 4096)

    # BN shift tiled to the (l, c)-major pre-pool feature layout.
    shift_tiled = jnp.tile(bn_shift, LC).reshape(1, FW)              # (1, 4096)

    # AvgPool1d(2,2) + PyTorch NCL flatten folded into the linear weight:
    #   W_head[n, l*C + c] = 0.5 * lin_w[n, c*LP + l//2]
    lin_w3 = raw["lin_w"].reshape(NUM_CLASSES, C, LP)                # [n, c, p]
    l_to_p = jnp.arange(LC) // 2
    w_head = jnp.transpose(lin_w3[:, :, l_to_p], (0, 2, 1))          # [n, l, c]
    w_head = 0.5 * w_head.reshape(NUM_CLASSES, FW)                   # (16, 4096)

    return dict(w_conv_toeplitz=w_conv,
                bn_shift_tiled=shift_tiled,
                w_head=w_head,
                lin_b_1n=raw["lin_b"].reshape(1, NUM_CLASSES))


# -------------------- pure-JAX reference (PyTorch semantics) --------------------

def reference_forward(x, raw):
    x2 = x.reshape(B, SPE)
    xpad = jnp.pad(x2, ((0, 0), (PAD, PAD)))
    idx = jnp.arange(LC)[:, None] + jnp.arange(KSIZE)[None, :]
    patches = xpad[:, idx]                                           # (B,LC,K)
    conv = jnp.einsum('blk,ck->bcl', patches, raw["conv_w"])         # (B,C,LC)
    scale = raw["gamma"] / jnp.sqrt(raw["r_var"] + BN_EPS)
    shift = raw["beta"] - raw["r_mean"] * scale
    h = jnp.maximum(conv * scale[None, :, None] + shift[None, :, None], 0.0)
    pooled = 0.5 * (h[:, :, 0::2] + h[:, :, 1::2])                   # (B,C,LP)
    flat = pooled.reshape(B, F)
    return flat @ raw["lin_w"].T + raw["lin_b"][None, :]


if __name__ == "__main__":
    key = jax.random.PRNGKey(0)
    k_x, k_p = jax.random.split(key)
    x = jax.random.normal(k_x, (B, 1, SPE, 1, 1), jnp.float32)

    raw = init_raw_params(k_p)
    params = fold_params(raw)

    logits = jax.block_until_ready(jax.jit(forward)(x, params))
    assert logits.shape == (B, NUM_CLASSES)
    assert bool(jnp.all(jnp.isfinite(logits)))

    ref = reference_forward(x, raw)
    assert bool(jnp.allclose(logits, ref, rtol=1e-3, atol=1e-4)), \
        float(jnp.max(jnp.abs(logits - ref)))

    print("KERNEL_OK")
</pallas_src>

<mosaic_0001>
module attributes {stable_mosaic.version = 11 : i64} {
  func.func @fused_forward_kernel(%arg0: memref<2x45xf32, #tpu.memory_space<vmem>>, %arg1: memref<45x4096xf32, #tpu.memory_space<vmem>>, %arg2: memref<1x4096xf32, #tpu.memory_space<vmem>>, %arg3: memref<16x4096xf32, #tpu.memory_space<vmem>>, %arg4: memref<1x16xf32, #tpu.memory_space<vmem>>, %arg5: memref<2x16xf32, #tpu.memory_space<vmem>>) attributes {dimension_semantics = [], scalar_prefetch = 0 : i64, scratch_operands = 0 : i64, tpu.core_type = #tpu.core_type<tc>} {
    %c0 = arith.constant 0 : index
    %c0_0 = arith.constant 0 : index
    %0 = vector.load %arg0[%c0, %c0_0] : memref<2x45xf32, #tpu.memory_space<vmem>>, vector<2x45xf32>
    %c0_1 = arith.constant 0 : index
    %c0_2 = arith.constant 0 : index
    %1 = vector.load %arg1[%c0_1, %c0_2] : memref<45x4096xf32, #tpu.memory_space<vmem>>, vector<45x4096xf32>
    %cst = arith.constant dense<0.000000e+00> : vector<2x4096xf32>
    %2 = tpu.matmul %0, %1, %cst {dimension_numbers = #tpu.dot_dimension_numbers<[1], [0], [0], [1], [0, 0, 1, 1], [], []>} : vector<2x45xf32>, vector<45x4096xf32>, vector<2x4096xf32> -> vector<2x4096xf32>
    %c0_3 = arith.constant 0 : index
    %c0_4 = arith.constant 0 : index
    %3 = vector.load %arg2[%c0_3, %c0_4] : memref<1x4096xf32, #tpu.memory_space<vmem>>, vector<1x4096xf32>
    %4 = vector.broadcast %3 : vector<1x4096xf32> to vector<2x4096xf32>
    %5 = arith.addf %2, %4 : vector<2x4096xf32>
    %cst_5 = arith.constant 0.000000e+00 : f32
    %6 = vector.broadcast %cst_5 : f32 to vector<2x4096xf32>
    %7 = arith.maximumf %5, %6 : vector<2x4096xf32>
    %c0_6 = arith.constant 0 : index
    %c0_7 = arith.constant 0 : index
    %8 = vector.load %arg3[%c0_6, %c0_7] : memref<16x4096xf32, #tpu.memory_space<vmem>>, vector<16x4096xf32>
    %cst_8 = arith.constant dense<0.000000e+00> : vector<2x16xf32>
    %9 = tpu.matmul %7, %8, %cst_8 {dimension_numbers = #tpu.dot_dimension_numbers<[1], [1], [0], [0], [0, 0, 1, 0], [], []>} : vector<2x4096xf32>, vector<16x4096xf32>, vector<2x16xf32> -> vector<2x16xf32>
    %c0_9 = arith.constant 0 : index
    %c0_10 = arith.constant 0 : index
    %10 = vector.load %arg4[%c0_9, %c0_10] : memref<1x16xf32, #tpu.memory_space<vmem>>, vector<1x16xf32>
    %11 = vector.broadcast %10 : vector<1x16xf32> to vector<2x16xf32>
    %12 = arith.addf %9, %11 : vector<2x16xf32>
    %c0_11 = arith.constant 0 : index
    %c0_12 = arith.constant 0 : index
    %13 = vector.load %arg5[%c0_11, %c0_12] : memref<2x16xf32, #tpu.memory_space<vmem>>, vector<2x16xf32>
    tpu.vector_store %arg5[%c0_11, %c0_12], %12 {strides = array<i32>} : memref<2x16xf32, #tpu.memory_space<vmem>>, vector<2x16xf32>,
    return
  }
}

</mosaic_0001>

<llo_original>
// kernel: forward.1
$region0: #{forward.1}
  #allocation0 [shape = 'u32[]', space=smem, size = 0x4, offset = 0x4, fixed_abs, tag = 'smem constant byte address 0x4 - core index']
  #allocation1 [shape = 'u32[144,128]{1,0:T(1,128)}', space=vmem, size = 0x12000, scoped, tag = 'internal scratch']
  %s0 = inlined_call_operand.hbm [shape: f32[2,45], index: 0, kind: input, shape index: {}]
  %s1 = inlined_call_operand.hbm [shape: f32[45,4096], index: 1, kind: input, shape index: {}]
  %s2 = inlined_call_operand.hbm [shape: f32[1,4096], index: 2, kind: input, shape index: {}]
  %s3 = inlined_call_operand.hbm [shape: f32[16,4096], index: 3, kind: input, shape index: {}]
  %s4 = inlined_call_operand.vmem [shape: f32[1,16], index: 4, kind: input, shape index: {}]
  %s5 = inlined_call_operand.hbm [shape: f32[2,16], index: 5, kind: output, shape index: {}]
  %s6 = sld [smem:[#allocation0]]
  $region46: #{forward.1} parent=0
    _
  %s8 = ssub.s32 1, %s6
  %s9 = scalar_select 0, %s8, %s6
  $region1: #{forward.1} parent=0
    #allocation2 [shape = 'u8[1024]{0}', space=vmem, size = 0x400, scoped, tag = 'input window, operand 0, single buffered']
    #allocation3 [shape = 's32[1]{0}', space=sflag, size = 0x4, scoped, tag = 'scoped memory for forward.1']
    #allocation4 [shape = 's32[1]{0}', space=sflag, size = 0x4, scoped, tag = 'scoped memory for forward.1']
    #allocation5 [shape = 'u8[786432]{0}', space=vmem, size = 0xc0000, scoped, tag = 'input window, operand 1, single buffered']
    #allocation6 [shape = 's32[1]{0}', space=sflag, size = 0x4, scoped, tag = 'scoped memory for forward.1']
    #allocation7 [shape = 'u8[16384]{0}', space=vmem, size = 0x4000, scoped, tag = 'input window, operand 2, single buffered']
    #allocation8 [shape = 'u8[262144]{0}', space=vmem, size = 0x40000, scoped, tag = 'input window, operand 3, single buffered']
    #allocation9 [shape = 's32[1]{0}', space=sflag, size = 0x4, scoped, tag = 'scoped memory for forward.1']
    #allocation10 [shape = 'u8[1024]{0}', space=vmem, size = 0x400, scoped, tag = 'output window, operand 0, single buffered']
    %10 = vsyncpa [#allocation3], 0
    %11 = vsyncpa [#allocation6], 0
    %12 = vsyncpa [#allocation9], 0
    %13 = vsyncpa [#allocation4], 0
    // Predicated region
    $region2: #{forward.1} parent=1 // pred_check
      _
    $region3: #{forward.1} parent=1 // pred_check_branch
      %15 = sbr.rel (0) target = $region5
    $region4: #{forward.1} parent=1 // pred_region
      %s17 = ssub.s32 32, 32
      %18 = vsyncadd [#allocation3], %s17
      %s20 = sshll.u32 [#allocation2], 4
      %s21 = int_to_ptr.vmem [resolvable:$true] %s20
      %23 = dma.hbm_to_vmem [thread:$0]  %s0, 32, %s21, [#allocation3]
    $region5: #{forward.1} parent=1 // pred_fallthru
      _
    // Predicated region
    $region6: #{forward.1} parent=1 // pred_check
      _
    $region7: #{forward.1} parent=1 // pred_check_branch
      %25 = sbr.rel (0) target = $region9
    $region8: #{forward.1} parent=1 // pred_region
      %s27 = ssub.s32 24576, 24576
      %28 = vsyncadd [#allocation6], %s27
      %s29 = sshll.u32 [#allocation5], 4
      %s30 = int_to_ptr.vmem [resolvable:$true] %s29
      %35 = dma.hbm_to_vmem [thread:$0]  %s1, 24576, %s30, [#allocation6], 4096, 4096, 256
    $region9: #{forward.1} parent=1 // pred_fallthru
      _
    // Predicated region
    $region10: #{forward.1} parent=1 // pred_check
      _
    $region11: #{forward.1} parent=1 // pred_check_branch
      %37 = sbr.rel (0) target = $region13
    $region12: #{forward.1} parent=1 // pred_region
      %s39 = ssub.s32 512, 512
      %40 = vsyncadd [#allocation6], %s39
      %s42 = sshll.u32 [#allocation7], 4
      %s43 = int_to_ptr.vmem [resolvable:$true] %s42
      %45 = dma.hbm_to_vmem [thread:$0]  %s2, 512, %s43, [#allocation6]
    $region13: #{forward.1} parent=1 // pred_fallthru
      _
    // Predicated region
    $region14: #{forward.1} parent=1 // pred_check
      _
    $region15: #{forward.1} parent=1 // pred_check_branch
      %47 = sbr.rel (0) target = $region17
    $region16: #{forward.1} parent=1 // pred_region
      %s49 = ssub.s32 8192, 8192
      %50 = vsyncadd [#allocation9], %s49
      %s51 = sshll.u32 [#allocation8], 4
      %s52 = int_to_ptr.vmem [resolvable:$true] %s51
      %57 = dma.hbm_to_vmem [thread:$0]  %s3, 8192, %s52, [#allocation9], 4096, 4096, 256
    $region17: #{forward.1} parent=1 // pred_fallthru
      _
    // Predicated region
    $region18: #{forward.1} parent=1 // pred_check
      _
    $region19: #{forward.1} parent=1 // pred_check_branch
      %59 = sbr.rel (0) target = $region21
    $region20: #{forward.1} parent=1 // pred_region
      _
    $region21: #{forward.1} parent=1 // pred_fallthru
      _
    // Predicated region
    $region22: #{forward.1} parent=1 // pred_check
      _
    $region23: #{forward.1} parent=1 // pred_check_branch
      %61 = sbr.rel (0) target = $region25
    $region24: #{forward.1} parent=1 // pred_region
      %62 = dma.done [#allocation3], 32
    $region25: #{forward.1} parent=1 // pred_fallthru
      _
    // Predicated region
    $region26: #{forward.1} parent=1 // pred_check
      _
    $region27: #{forward.1} parent=1 // pred_check_branch
      %64 = sbr.rel (0) target = $region29
    $region28: #{forward.1} parent=1 // pred_region
      %65 = dma.done [#allocation6], 24576
    $region29: #{forward.1} parent=1 // pred_fallthru
      _
    // Predicated region
    $region30: #{forward.1} parent=1 // pred_check
      _
    $region31: #{forward.1} parent=1 // pred_check_branch
      %67 = sbr.rel (0) target = $region33
    $region32: #{forward.1} parent=1 // pred_region
      %68 = dma.done [#allocation6], 512
    $region33: #{forward.1} parent=1 // pred_fallthru
      _
    // Predicated region
    $region34: #{forward.1} parent=1 // pred_check
      _
    $region35: #{forward.1} parent=1 // pred_check_branch
      %70 = sbr.rel (0) target = $region37
    $region36: #{forward.1} parent=1 // pred_region
      %71 = dma.done [#allocation9], 8192
    $region37: #{forward.1} parent=1 // pred_fallthru
      _
    %v72 = vld [vmem:[#allocation2] sm:$0x3]
    %v73 = vld [vmem:[#allocation5] sm:$0xff]
    %v74 = vld [vmem:[#allocation5 + $0x8] sm:$0xff]
    %v75 = vld [vmem:[#allocation5 + $0x10] sm:$0xff]
    %v76 = vld [vmem:[#allocation5 + $0x18] sm:$0xff]
    %v77 = vld [vmem:[#allocation5 + $0x20] sm:$0xff]
    %v78 = vld [vmem:[#allocation5 + $0x28] sm:$0xff]
    %v79 = vld [vmem:[#allocation5 + $0x30] sm:$0xff]
    %v80 = vld [vmem:[#allocation5 + $0x38] sm:$0xff]
    %v81 = vld [vmem:[#allocation5 + $0x40] sm:$0xff]
    %v82 = vld [vmem:[#allocation5 + $0x48] sm:$0xff]
    %v83 = vld [vmem:[#allocation5 + $0x50] sm:$0xff]
    %v84 = vld [vmem:[#allocation5 + $0x58] sm:$0xff]
    %v85 = vld [vmem:[#allocation5 + $0x60] sm:$0xff]
    %v86 = vld [vmem:[#allocation5 + $0x68] sm:$0xff]
    %v87 = vld [vmem:[#allocation5 + $0x70] sm:$0xff]
    %v88 = vld [vmem:[#allocation5 + $0x78] sm:$0xff]
    %v89 = vld [vmem:[#allocation5 + $0x80] sm:$0xff]
    %v90 = vld [vmem:[#allocation5 + $0x88] sm:$0xff]
    %v91 = vld [vmem:[#allocation5 + $0x90] sm:$0xff]
    %v92 = vld [vmem:[#allocation5 + $0x98] sm:$0xff]
    %v93 = vld [vmem:[#allocation5 + $0xa0] sm:$0xff]
    %v94 = vld [vmem:[#allocation5 + $0xa8] sm:$0xff]
    %v95 = vld [vmem:[#allocation5 + $0xb0] sm:$0xff]
    %v96 = vld [vmem:[#allocation5 + $0xb8] sm:$0xff]
    %v97 = vld [vmem:[#allocation5 + $0xc0] sm:$0xff]
    %v98 = vld [vmem:[#allocation5 + $0xc8] sm:$0xff]
    %v99 = vld [vmem:[#allocation5 + $0xd0] sm:$0xff]
    %v100 = vld [vmem:[#allocation5 + $0xd8] sm:$0xff]
    %v101 = vld [vmem:[#allocation5 + $0xe0] sm:$0xff]
    %v102 = vld [vmem:[#allocation5 + $0xe8] sm:$0xff]
    %v103 = vld [vmem:[#allocation5 + $0xf0] sm:$0xff]
    %v104 = vld [vmem:[#allocation5 + $0xf8] sm:$0xff]
    %v105 = vld [vmem:[#allocation5 + $0x100] sm:$0xff]
    %v106 = vld [vmem:[#allocation5 + $0x108] sm:$0xff]
    %v107 = vld [vmem:[#allocation5 + $0x110] sm:$0xff]
    %v108 = vld [vmem:[#allocation5 + $0x118] sm:$0xff]
    %v109 = vld [vmem:[#allocation5 + $0x120] sm:$0xff]
    %v110 = vld [vmem:[#allocation5 + $0x128] sm:$0xff]
    %v111 = vld [vmem:[#allocation5 + $0x130] sm:$0xff]
    %v112 = vld [vmem:[#allocation5 + $0x138] sm:$0xff]
    %v113 = vld [vmem:[#allocation5 + $0x140] sm:$0xff]
    %v114 = vld [vmem:[#allocation5 + $0x148] sm:$0xff]
    %v115 = vld [vmem:[#allocation5 + $0x150] sm:$0xff]
    %v116 = vld [vmem:[#allocation5 + $0x158] sm:$0xff]
    %v117 = vld [vmem:[#allocation5 + $0x160] sm:$0xff]
    %v118 = vld [vmem:[#allocation5 + $0x168] sm:$0xff]
    %v119 = vld [vmem:[#allocation5 + $0x170] sm:$0xff]
    %v120 = vld [vmem:[#allocation5 + $0x178] sm:$0xff]
    %v121 = vld [vmem:[#allocation5 + $0x180] sm:$0xff]
    %v122 = vld [vmem:[#allocation5 + $0x188] sm:$0xff]
    %v123 = vld [vmem:[#allocation5 + $0x190] sm:$0xff]
    %v124 = vld [vmem:[#allocation5 + $0x198] sm:$0xff]
    %v125 = vld [vmem:[#allocation5 + $0x1a0] sm:$0xff]
    %v126 = vld [vmem:[#allocation5 + $0x1a8] sm:$0xff]
    %v127 = vld [vmem:[#allocation5 + $0x1b0] sm:$0xff]
    %v128 = vld [vmem:[#allocation5 + $0x1b8] sm:$0xff]
    %v129 = vld [vmem:[#allocation5 + $0x1c0] sm:$0xff]
    %v130 = vld [vmem:[#allocation5 + $0x1c8] sm:$0xff]
    %v131 = vld [vmem:[#allocation5 + $0x1d0] sm:$0xff]
    %v132 = vld [vmem:[#allocation5 + $0x1d8] sm:$0xff]
    %v133 = vld [vmem:[#allocation5 + $0x1e0] sm:$0xff]
    %v134 = vld [vmem:[#allocation5 + $0x1e8] sm:$0xff]
    %v135 = vld [vmem:[#allocation5 + $0x1f0] sm:$0xff]
    %v136 = vld [vmem:[#allocation5 + $0x1f8] sm:$0xff]
    %v137 = vld [vmem:[#allocation5 + $0x200] sm:$0xff]
    %v138 = vld [vmem:[#allocation5 + $0x208] sm:$0xff]
    %v139 = vld [vmem:[#allocation5 + $0x210] sm:$0xff]
    %v140 = vld [vmem:[#allocation5 + $0x218] sm:$0xff]
    %v141 = vld [vmem:[#allocation5 + $0x220] sm:$0xff]
    %v142 = vld [vmem:[#allocation5 + $0x228] sm:$0xff]
    %v143 = vld [vmem:[#allocation5 + $0x230] sm:$0xff]
    %v144 = vld [vmem:[#allocation5 + $0x238] sm:$0xff]
    %v145 = vld [vmem:[#allocation5 + $0x240] sm:$0xff]
    %v146 = vld [vmem:[#allocation5 + $0x248] sm:$0xff]
    %v147 = vld [vmem:[#allocation5 + $0x250] sm:$0xff]
    %v148 = vld [vmem:[#allocation5 + $0x258] sm:$0xff]
    %v149 = vld [vmem:[#allocation5 + $0x260] sm:$0xff]
    %v150 = vld [vmem:[#allocation5 + $0x268] sm:$0xff]
    %v151 = vld [vmem:[#allocation5 + $0x270] sm:$0xff]
    %v152 = vld [vmem:[#allocation5 + $0x278] sm:$0xff]
    %v153 = vld [vmem:[#allocation5 + $0x280] sm:$0xff]
    %v154 = vld [vmem:[#allocation5 + $0x288] sm:$0xff]
    %v155 = vld [vmem:[#allocation5 + $0x290] sm:$0xff]
    %v156 = vld [vmem:[#allocation5 + $0x298] sm:$0xff]
    %v157 = vld [vmem:[#allocation5 + $0x2a0] sm:$0xff]
    %v158 = vld [vmem:[#allocation5 + $0x2a8] sm:$0xff]
    %v159 = vld [vmem:[#allocation5 + $0x2b0] sm:$0xff]
    %v160 = vld [vmem:[#allocation5 + $0x2b8] sm:$0xff]
    %v161 = vld [vmem:[#allocation5 + $0x2c0] sm:$0xff]
    %v162 = vld [vmem:[#allocation5 + $0x2c8] sm:$0xff]
    %v163 = vld [vmem:[#allocation5 + $0x2d0] sm:$0xff]
    %v164 = vld [vmem:[#allocation5 + $0x2d8] sm:$0xff]
    %v165 = vld [vmem:[#allocation5 + $0x2e0] sm:$0xff]
    %v166 = vld [vmem:[#allocation5 + $0x2e8] sm:$0xff]
    %v167 = vld [vmem:[#allocation5 + $0x2f0] sm:$0xff]
    %v168 = vld [vmem:[#allocation5 + $0x2f8] sm:$0xff]
    %v169 = vld [vmem:[#allocation5 + $0x300] sm:$0xff]
    %v170 = vld [vmem:[#allocation5 + $0x308] sm:$0xff]
    %v171 = vld [vmem:[#allocation5 + $0x310] sm:$0xff]
    %v172 = vld [vmem:[#allocation5 + $0x318] sm:$0xff]
    %v173 = vld [vmem:[#allocation5 + $0x320] sm:$0xff]
    %v174 = vld [vmem:[#allocation5 + $0x328] sm:$0xff]
    %v175 = vld [vmem:[#allocation5 + $0x330] sm:$0xff]
    %v176 = vld [vmem:[#allocation5 + $0x338] sm:$0xff]
    %v177 = vld [vmem:[#allocation5 + $0x340] sm:$0xff]
    %v178 = vld [vmem:[#allocation5 + $0x348] sm:$0xff]
    %v179 = vld [vmem:[#allocation5 + $0x350] sm:$0xff]
    %v180 = vld [vmem:[#allocation5 + $0x358] sm:$0xff]
    %v181 = vld [vmem:[#allocation5 + $0x360] sm:$0xff]
    %v182 = vld [vmem:[#allocation5 + $0x368] sm:$0xff]
    %v183 = vld [vmem:[#allocation5 + $0x370] sm:$0xff]
    %v184 = vld [vmem:[#allocation5 + $0x378] sm:$0xff]
    %v185 = vld [vmem:[#allocation5 + $0x380] sm:$0xff]
    %v186 = vld [vmem:[#allocation5 + $0x388] sm:$0xff]
    %v187 = vld [vmem:[#allocation5 + $0x390] sm:$0xff]
    %v188 = vld [vmem:[#allocation5 + $0x398] sm:$0xff]
    %v189 = vld [vmem:[#allocation5 + $0x3a0] sm:$0xff]
    %v190 = vld [vmem:[#allocation5 + $0x3a8] sm:$0xff]
    %v191 = vld [vmem:[#allocation5 + $0x3b0] sm:$0xff]
    %v192 = vld [vmem:[#allocation5 + $0x3b8] sm:$0xff]
    %v193 = vld [vmem:[#allocation5 + $0x3c0] sm:$0xff]
    %v194 = vld [vmem:[#allocation5 + $0x3c8] sm:$0xff]
    %v195 = vld [vmem:[#allocation5 + $0x3d0] sm:$0xff]
    %v196 = vld [vmem:[#allocation5 + $0x3d8] sm:$0xff]
    %v197 = vld [vmem:[#allocation5 + $0x3e0] sm:$0xff]
    %v198 = vld [vmem:[#allocation5 + $0x3e8] sm:$0xff]
    %v199 = vld [vmem:[#allocation5 + $0x3f0] sm:$0xff]
    %v200 = vld [vmem:[#allocation5 + $0x3f8] sm:$0xff]
    %v201 = vld [vmem:[#allocation5 + $0x400] sm:$0xff]
    %v202 = vld [vmem:[#allocation5 + $0x408] sm:$0xff]
    %v203 = vld [vmem:[#allocation5 + $0x410] sm:$0xff]
    %v204 = vld [vmem:[#allocation5 + $0x418] sm:$0xff]
    %v205 = vld [vmem:[#allocation5 + $0x420] sm:$0xff]
    %v206 = vld [vmem:[#allocation5 + $0x428] sm:$0xff]
    %v207 = vld [vmem:[#allocation5 + $0x430] sm:$0xff]
    %v208 = vld [vmem:[#allocation5 + $0x438] sm:$0xff]
    %v209 = vld [vmem:[#allocation5 + $0x440] sm:$0xff]
    %v210 = vld [vmem:[#allocation5 + $0x448] sm:$0xff]
    %v211 = vld [vmem:[#allocation5 + $0x450] sm:$0xff]
    %v212 = vld [vmem:[#allocation5 + $0x458] sm:$0xff]
    %v213 = vld [vmem:[#allocation5 + $0x460] sm:$0xff]
    %v214 = vld [vmem:[#allocation5 + $0x468] sm:$0xff]
    %v215 = vld [vmem:[#allocation5 + $0x470] sm:$0xff]
    %v216 = vld [vmem:[#allocation5 + $0x478] sm:$0xff]
    %v217 = vld [vmem:[#allocation5 + $0x480] sm:$0xff]
    %v218 = vld [vmem:[#allocation5 + $0x488] sm:$0xff]
    %v219 = vld [vmem:[#allocation5 + $0x490] sm:$0xff]
    %v220 = vld [vmem:[#allocation5 + $0x498] sm:$0xff]
    %v221 = vld [vmem:[#allocation5 + $0x4a0] sm:$0xff]
    %v222 = vld [vmem:[#allocation5 + $0x4a8] sm:$0xff]
    %v223 = vld [vmem:[#allocation5 + $0x4b0] sm:$0xff]
    %v224 = vld [vmem:[#allocation5 + $0x4b8] sm:$0xff]
    %v225 = vld [vmem:[#allocation5 + $0x4c0] sm:$0xff]
    %v226 = vld [vmem:[#allocation5 + $0x4c8] sm:$0xff]
    %v227 = vld [vmem:[#allocation5 + $0x4d0] sm:$0xff]
    %v228 = vld [vmem:[#allocation5 + $0x4d8] sm:$0xff]
    %v229 = vld [vmem:[#allocation5 + $0x4e0] sm:$0xff]
    %v230 = vld [vmem:[#allocation5 + $0x4e8] sm:$0xff]
    %v231 = vld [vmem:[#allocation5 + $0x4f0] sm:$0xff]
    %v232 = vld [vmem:[#allocation5 + $0x4f8] sm:$0xff]
    %v233 = vld [vmem:[#allocation5 + $0x500] sm:$0x1f]
    %v234 = vld [vmem:[#allocation5 + $0x508] sm:$0x1f]
    %v235 = vld [vmem:[#allocation5 + $0x510] sm:$0x1f]
    %v236 = vld [vmem:[#allocation5 + $0x518] sm:$0x1f]
    %v237 = vld [vmem:[#allocation5 + $0x520] sm:$0x1f]
    %v238 = vld [vmem:[#allocation5 + $0x528] sm:$0x1f]
    %v239 = vld [vmem:[#allocation5 + $0x530] sm:$0x1f]
    %v240 = vld [vmem:[#allocation5 + $0x538] sm:$0x1f]
    %v241 = vld [vmem:[#allocation5 + $0x540] sm:$0x1f]
    %v242 = vld [vmem:[#allocation5 + $0x548] sm:$0x1f]
    %v243 = vld [vmem:[#allocation5 + $0x550] sm:$0x1f]
    %v244 = vld [vmem:[#allocation5 + $0x558] sm:$0x1f]
    %v245 = vld [vmem:[#allocation5 + $0x560] sm:$0x1f]
    %v246 = vld [vmem:[#allocation5 + $0x568] sm:$0x1f]
    %v247 = vld [vmem:[#allocation5 + $0x570] sm:$0x1f]
    %v248 = vld [vmem:[#allocation5 + $0x578] sm:$0x1f]
    %v249 = vld [vmem:[#allocation5 + $0x580] sm:$0x1f]
    %v250 = vld [vmem:[#allocation5 + $0x588] sm:$0x1f]
    %v251 = vld [vmem:[#allocation5 + $0x590] sm:$0x1f]
    %v252 = vld [vmem:[#allocation5 + $0x598] sm:$0x1f]
    %v253 = vld [vmem:[#allocation5 + $0x5a0] sm:$0x1f]
    %v254 = vld [vmem:[#allocation5 + $0x5a8] sm:$0x1f]
    %v255 = vld [vmem:[#allocation5 + $0x5b0] sm:$0x1f]
    %v256 = vld [vmem:[#allocation5 + $0x5b8] sm:$0x1f]
    %v257 = vld [vmem:[#allocation5 + $0x5c0] sm:$0x1f]
    %v258 = vld [vmem:[#allocation5 + $0x5c8] sm:$0x1f]
    %v259 = vld [vmem:[#allocation5 + $0x5d0] sm:$0x1f]
    %v260 = vld [vmem:[#allocation5 + $0x5d8] sm:$0x1f]
    %v261 = vld [vmem:[#allocation5 + $0x5e0] sm:$0x1f]
    %v262 = vld [vmem:[#allocation5 + $0x5e8] sm:$0x1f]
    %v263 = vld [vmem:[#allocation5 + $0x5f0] sm:$0x1f]
    %v264 = vld [vmem:[#allocation5 + $0x5f8] sm:$0x1f]
    %v265 = vld [vmem:[#allocation7] sm:$0xff]
    %v266 = vld [vmem:[#allocation7 + $0x8] sm:$0xff]
    %v267 = vld [vmem:[#allocation7 + $0x10] sm:$0xff]
    %v268 = vld [vmem:[#allocation7 + $0x18] sm:$0xff]
    %v273 = vlaneseq
    %v274 = vshrl.u32 %v273, 7
    %v275 = vsub.s32 0, %v274
    %v276 = vrot.slane %v265, %v275
    %v277 = vlaneseq
    %v278 = vshrl.u32 %v277, 7
    %v279 = vsub.s32 1, %v278
    %v280 = vrot.slane %v265, %v279
    %v281 = vlaneseq
    %v282 = vshrl.u32 %v281, 7
    %v283 = vsub.s32 2, %v282
    %v284 = vrot.slane %v265, %v283
    %v285 = vlaneseq
    %v286 = vshrl.u32 %v285, 7
    %v287 = vsub.s32 3, %v286
    %v288 = vrot.slane %v265, %v287
    %v289 = vlaneseq
    %v290 = vshrl.u32 %v289, 7
    %v291 = vsub.s32 4, %v290
    %v292 = vrot.slane %v265, %v291
    %v293 = vlaneseq
    %v294 = vshrl.u32 %v293, 7
    %v295 = vsub.s32 5, %v294
    %v296 = vrot.slane %v265, %v295
    %v297 = vlaneseq
    %v298 = vshrl.u32 %v297, 7
    %v299 = vsub.s32 6, %v298
    %v300 = vrot.slane %v265, %v299
    %v301 = vlaneseq
    %v302 = vshrl.u32 %v301, 7
    %v303 = vsub.s32 7, %v302
    %v304 = vrot.slane %v265, %v303
    %v305 = vlaneseq
    %v306 = vshrl.u32 %v305, 7
    %v307 = vsub.s32 0, %v306
    %v308 = vrot.slane %v266, %v307
    %v309 = vlaneseq
    %v310 = vshrl.u32 %v309, 7
    %v311 = vsub.s32 1, %v310
    %v312 = vrot.slane %v266, %v311
    %v313 = vlaneseq
    %v314 = vshrl.u32 %v313, 7
    %v315 = vsub.s32 2, %v314
    %v316 = vrot.slane %v266, %v315
    %v317 = vlaneseq
    %v318 = vshrl.u32 %v317, 7
    %v319 = vsub.s32 3, %v318
    %v320 = vrot.slane %v266, %v319
    %v321 = vlaneseq
    %v322 = vshrl.u32 %v321, 7
    %v323 = vsub.s32 4, %v322
    %v324 = vrot.slane %v266, %v323
    %v325 = vlaneseq
    %v326 = vshrl.u32 %v325, 7
    %v327 = vsub.s32 5, %v326
    %v328 = vrot.slane %v266, %v327
    %v329 = vlaneseq
    %v330 = vshrl.u32 %v329, 7
    %v331 = vsub.s32 6, %v330
    %v332 = vrot.slane %v266, %v331
    %v333 = vlaneseq
    %v334 = vshrl.u32 %v333, 7
    %v335 = vsub.s32 7, %v334
    %v336 = vrot.slane %v266, %v335
    %v337 = vlaneseq
    %v338 = vshrl.u32 %v337, 7
    %v339 = vsub.s32 0, %v338
    %v340 = vrot.slane %v267, %v339
    %v341 = vlaneseq
    %v342 = vshrl.u32 %v341, 7
    %v343 = vsub.s32 1, %v342
    %v344 = vrot.slane %v267, %v343
    %v345 = vlaneseq
    %v346 = vshrl.u32 %v345, 7
    %v347 = vsub.s32 2, %v346
    %v348 = vrot.slane %v267, %v347
    %v349 = vlaneseq
    %v350 = vshrl.u32 %v349, 7
    %v351 = vsub.s32 3, %v350
    %v352 = vrot.slane %v267, %v351
    %v353 = vlaneseq
    %v354 = vshrl.u32 %v353, 7
    %v355 = vsub.s32 4, %v354
    %v356 = vrot.slane %v267, %v355
    %v357 = vlaneseq
    %v358 = vshrl.u32 %v357, 7
    %v359 = vsub.s32 5, %v358
    %v360 = vrot.slane %v267, %v359
    %v361 = vlaneseq
    %v362 = vshrl.u32 %v361, 7
    %v363 = vsub.s32 6, %v362
    %v364 = vrot.slane %v267, %v363
    %v365 = vlaneseq
    %v366 = vshrl.u32 %v365, 7
    %v367 = vsub.s32 7, %v366
    %v368 = vrot.slane %v267, %v367
    %v369 = vlaneseq
    %v370 = vshrl.u32 %v369, 7
    %v371 = vsub.s32 0, %v370
    %v372 = vrot.slane %v268, %v371
    %v373 = vlaneseq
    %v374 = vshrl.u32 %v373, 7
    %v375 = vsub.s32 1, %v374
    %v376 = vrot.slane %v268, %v375
    %v377 = vlaneseq
    %v378 = vshrl.u32 %v377, 7
    %v379 = vsub.s32 2, %v378
    %v380 = vrot.slane %v268, %v379
    %v381 = vlaneseq
    %v382 = vshrl.u32 %v381, 7
    %v383 = vsub.s32 3, %v382
    %v384 = vrot.slane %v268, %v383
    %v385 = vlaneseq
    %v386 = vshrl.u32 %v385, 7
    %v387 = vsub.s32 4, %v386
    %v388 = vrot.slane %v268, %v387
    %v389 = vlaneseq
    %v390 = vshrl.u32 %v389, 7
    %v391 = vsub.s32 5, %v390
    %v392 = vrot.slane %v268, %v391
    %v393 = vlaneseq
    %v394 = vshrl.u32 %v393, 7
    %v395 = vsub.s32 6, %v394
    %v396 = vrot.slane %v268, %v395
    %v397 = vlaneseq
    %v398 = vshrl.u32 %v397, 7
    %v399 = vsub.s32 7, %v398
    %v400 = vrot.slane %v268, %v399
    %vm433 = vcmask 367616
    %v435 = vsel %vm433, %v72, 0
    %vm437 = vcmask 1044480
    %v439 = vsel %vm437, %v233, 0
    %v442 = vsel %vm437, %v234, 0
    %v445 = vsel %vm437, %v235, 0
    %v448 = vsel %vm437, %v236, 0
    %v451 = vsel %vm437, %v237, 0
    %v454 = vsel %vm437, %v238, 0
    %v457 = vsel %vm437, %v239, 0
    %v460 = vsel %vm437, %v240, 0
    %v463 = vsel %vm437, %v241, 0
    %v466 = vsel %vm437, %v242, 0
    %v469 = vsel %vm437, %v243, 0
    %v472 = vsel %vm437, %v244, 0
    %v475 = vsel %vm437, %v245, 0
    %v478 = vsel %vm437, %v246, 0
    %v481 = vsel %vm437, %v247, 0
    %v484 = vsel %vm437, %v248, 0
    %v487 = vsel %vm437, %v249, 0
    %v490 = vsel %vm437, %v250, 0
    %v493 = vsel %vm437, %v251, 0
    %v496 = vsel %vm437, %v252, 0
    %v499 = vsel %vm437, %v253, 0
    %v502 = vsel %vm437, %v254, 0
    %v505 = vsel %vm437, %v255, 0
    %v508 = vsel %vm437, %v256, 0
    %v511 = vsel %vm437, %v257, 0
    %v514 = vsel %vm437, %v258, 0
    %v517 = vsel %vm437, %v259, 0
    %v520 = vsel %vm437, %v260, 0
    %v523 = vsel %vm437, %v261, 0
    %v526 = vsel %vm437, %v262, 0
    %v529 = vsel %vm437, %v263, 0
    %v532 = vsel %vm437, %v264, 0
    %534 = vmatprep.subr.mxu0 0.0
    %535 = vmatpush1.msra.mxu0 0.0
    %536 = vmatprep.subr.mxu0 0.0
    %537 = vmatpush1.msra.mxu0 0.0
    %538 = vmatprep.subr.mxu0 0.0
    %539 = vmatpush1.msra.mxu0 0.0
    %540 = vmatprep.subr.mxu0 0.0
    %541 = vmatpush1.msra.mxu0 0.0
    %542 = vmatprep.subr.mxu0 0.0
    %543 = vmatpush1.msra.mxu0 0.0
    %544 = vmatprep.subr.mxu0 0.0
    %545 = vmatpush1.msra.mxu0 0.0
    %546 = vmatprep.subr.mxu0 0.0
    %547 = vmatpush1.msra.mxu0 0.0
    %548 = vmatprep.subr.mxu0 0.0
    %549 = vmatpush1.msra.mxu0 0.0
    %550 = vmatprep.subr.mxu0 0.0
    %551 = vmatpush1.msra.mxu0 0.0
    %552 = vmatprep.subr.mxu0 0.0
    %553 = vmatpush1.msra.mxu0 0.0
    %554 = vmatprep.subr.mxu0 %v442
    %555 = vmatpush1.msra.mxu0 %v439
    %556 = vmatprep.subr.mxu0 %v202
    %557 = vmatpush1.msra.mxu0 %v201
    %558 = vmatprep.subr.mxu0 %v170
    %559 = vmatpush1.msra.mxu0 %v169
    %560 = vmatprep.subr.mxu0 %v138
    %561 = vmatpush1.msra.mxu0 %v137
    %562 = vmatprep.subr.mxu0 %v106
    %563 = vmatpush1.msra.mxu0 %v105
    %564 = vmatprep.subr.mxu0 %v74
    %565 = vmatpush1.msra.mxu0 %v73
    %566 = vmatprep.subr.mxu0 0.0
    %567 = vmatpush2.msra.mxu0 0.0
    %568 = vmatprep.subr.mxu0 0.0
    %569 = vmatpush2.msra.mxu0 0.0
    %570 = vmatprep.subr.mxu0 0.0
    %571 = vmatpush2.msra.mxu0 0.0
    %572 = vmatprep.subr.mxu0 0.0
    %573 = vmatpush2.msra.mxu0 0.0
    %574 = vmatprep.subr.mxu0 0.0
    %575 = vmatpush2.msra.mxu0 0.0
    %576 = vmatprep.subr.mxu0 0.0
    %577 = vmatpush2.msra.mxu0 0.0
    %578 = vmatprep.subr.mxu0 0.0
    %579 = vmatpush2.msra.mxu0 0.0
    %580 = vmatprep.subr.mxu0 0.0
    %581 = vmatpush2.msra.mxu0 0.0
    %582 = vmatprep.subr.mxu0 0.0
    %583 = vmatpush2.msra.mxu0 0.0
    %584 = vmatprep.subr.mxu0 0.0
    %585 = vmatpush2.msra.mxu0 0.0
    %586 = vmatprep.subr.mxu0 0.0
    %587 = vmatpush2.msra.mxu0 0.0
    %588 = vmatprep.subr.mxu0 0.0
    %589 = vmatpush2.msra.mxu0 0.0
    %590 = vmatprep.subr.mxu0 0.0
    %591 = vmatpush2.msra.mxu0 0.0
    %592 = vmatprep.subr.mxu0 0.0
    %593 = vmatpush2.msra.mxu0 0.0
    %594 = vmatprep.subr.mxu0 0.0
    %595 = vmatpush2.msra.mxu0 0.0
    %596 = vmatprep.subr.mxu0 0.0
    %597 = vmatpush2.msra.mxu0 0.0
    %598 = vmatprep.mubr.f32.mxu0 0.0
    %599 = vmatmul.mubr.f32.gmra.mxu0 %v435
    %v600 = vpop.f32.mrf.mxu0
    %v601 = vadd.f32 %v276, %v600
    %v602 = vpop.f32.mrf.mxu0
    %v603 = vadd.f32 %v280, %v602
    %604 = vdwg.mxu0
    %605 = vmatprep.subr.mxu0 0.0
    %606 = vmatpush1.msra.mxu0 0.0
    %607 = vmatprep.subr.mxu0 0.0
    %608 = vmatpush1.msra.mxu0 0.0
    %609 = vmatprep.subr.mxu0 0.0
    %610 = vmatpush1.msra.mxu0 0.0
    %611 = vmatprep.subr.mxu0 0.0
    %612 = vmatpush1.msra.mxu0 0.0
    %613 = vmatprep.subr.mxu0 0.0
    %614 = vmatpush1.msra.mxu0 0.0
    %615 = vmatprep.subr.mxu0 0.0
    %616 = vmatpush1.msra.mxu0 0.0
    %617 = vmatprep.subr.mxu0 0.0
    %618 = vmatpush1.msra.mxu0 0.0
    %619 = vmatprep.subr.mxu0 0.0
    %620 = vmatpush1.msra.mxu0 0.0
    %621 = vmatprep.subr.mxu0 0.0
    %622 = vmatpush1.msra.mxu0 0.0
    %623 = vmatprep.subr.mxu0 0.0
    %624 = vmatpush1.msra.mxu0 0.0
    %625 = vmatprep.subr.mxu0 %v448
    %626 = vmatpush1.msra.mxu0 %v445
    %627 = vmatprep.subr.mxu0 %v204
    %628 = vmatpush1.msra.mxu0 %v203
    %629 = vmatprep.subr.mxu0 %v172
    %630 = vmatpush1.msra.mxu0 %v171
    %631 = vmatprep.subr.mxu0 %v140
    %632 = vmatpush1.msra.mxu0 %v139
    %633 = vmatprep.subr.mxu0 %v108
    %634 = vmatpush1.msra.mxu0 %v107
    %635 = vmatprep.subr.mxu0 %v76
    %636 = vmatpush1.msra.mxu0 %v75
    %637 = vmatprep.subr.mxu0 0.0
    %638 = vmatpush2.msra.mxu0 0.0
    %639 = vmatprep.subr.mxu0 0.0
    %640 = vmatpush2.msra.mxu0 0.0
    %641 = vmatprep.subr.mxu0 0.0
    %642 = vmatpush2.msra.mxu0 0.0
    %643 = vmatprep.subr.mxu0 0.0
    %644 = vmatpush2.msra.mxu0 0.0
    %645 = vmatprep.subr.mxu0 0.0
    %646 = vmatpush2.msra.mxu0 0.0
    %647 = vmatprep.subr.mxu0 0.0
    %648 = vmatpush2.msra.mxu0 0.0
    %649 = vmatprep.subr.mxu0 0.0
    %650 = vmatpush2.msra.mxu0 0.0
    %651 = vmatprep.subr.mxu0 0.0
    %652 = vmatpush2.msra.mxu0 0.0
    %653 = vmatprep.subr.mxu0 0.0
    %654 = vmatpush2.msra.mxu0 0.0
    %655 = vmatprep.subr.mxu0 0.0
    %656 = vmatpush2.msra.mxu0 0.0
    %657 = vmatprep.subr.mxu0 0.0
    %658 = vmatpush2.msra.mxu0 0.0
    %659 = vmatprep.subr.mxu0 0.0
    %660 = vmatpush2.msra.mxu0 0.0
    %661 = vmatprep.subr.mxu0 0.0
    %662 = vmatpush2.msra.mxu0 0.0
    %663 = vmatprep.subr.mxu0 0.0
    %664 = vmatpush2.msra.mxu0 0.0
    %665 = vmatprep.subr.mxu0 0.0
    %666 = vmatpush2.msra.mxu0 0.0
    %667 = vmatprep.subr.mxu0 0.0
    %668 = vmatpush2.msra.mxu0 0.0
    %669 = vmatprep.mubr.f32.mxu0 0.0
    %670 = vmatmul.mubr.f32.gmra.mxu0 %v435
    %v671 = vpop.f32.mrf.mxu0
    %v672 = vadd.f32 %v284, %v671
    %v673 = vpop.f32.mrf.mxu0
    %v674 = vadd.f32 %v288, %v673
    %675 = vdwg.mxu0
    %676 = vmatprep.subr.mxu0 0.0
    %677 = vmatpush1.msra.mxu0 0.0
    %678 = vmatprep.subr.mxu0 0.0
    %679 = vmatpush1.msra.mxu0 0.0
    %680 = vmatprep.subr.mxu0 0.0
    %681 = vmatpush1.msra.mxu0 0.0
    %682 = vmatprep.subr.mxu0 0.0
    %683 = vmatpush1.msra.mxu0 0.0
    %684 = vmatprep.subr.mxu0 0.0
    %685 = vmatpush1.msra.mxu0 0.0
    %686 = vmatprep.subr.mxu0 0.0
    %687 = vmatpush1.msra.mxu0 0.0
    %688 = vmatprep.subr.mxu0 0.0
    %689 = vmatpush1.msra.mxu0 0.0
    %690 = vmatprep.subr.mxu0 0.0
    %691 = vmatpush1.msra.mxu0 0.0
    %692 = vmatprep.subr.mxu0 0.0
    %693 = vmatpush1.msra.mxu0 0.0
    %694 = vmatprep.subr.mxu0 0.0
    %695 = vmatpush1.msra.mxu0 0.0
    %696 = vmatprep.subr.mxu0 %v454
    %697 = vmatpush1.msra.mxu0 %v451
    %698 = vmatprep.subr.mxu0 %v206
    %699 = vmatpush1.msra.mxu0 %v205
    %700 = vmatprep.subr.mxu0 %v174
    %701 = vmatpush1.msra.mxu0 %v173
    %702 = vmatprep.subr.mxu0 %v142
    %703 = vmatpush1.msra.mxu0 %v141
    %704 = vmatprep.subr.mxu0 %v110
    %705 = vmatpush1.msra.mxu0 %v109
    %706 = vmatprep.subr.mxu0 %v78
    %707 = vmatpush1.msra.mxu0 %v77
    %708 = vmatprep.subr.mxu0 0.0
    %709 = vmatpush2.msra.mxu0 0.0
    %710 = vmatprep.subr.mxu0 0.0
    %711 = vmatpush2.msra.mxu0 0.0
    %712 = vmatprep.subr.mxu0 0.0
    %713 = vmatpush2.msra.mxu0 0.0
    %714 = vmatprep.subr.mxu0 0.0
    %715 = vmatpush2.msra.mxu0 0.0
    %716 = vmatprep.subr.mxu0 0.0
    %717 = vmatpush2.msra.mxu0 0.0
    %718 = vmatprep.subr.mxu0 0.0
    %719 = vmatpush2.msra.mxu0 0.0
    %720 = vmatprep.subr.mxu0 0.0
    %721 = vmatpush2.msra.mxu0 0.0
    %722 = vmatprep.subr.mxu0 0.0
    %723 = vmatpush2.msra.mxu0 0.0
    %724 = vmatprep.subr.mxu0 0.0
    %725 = vmatpush2.msra.mxu0 0.0
    %726 = vmatprep.subr.mxu0 0.0
    %727 = vmatpush2.msra.mxu0 0.0
    %728 = vmatprep.subr.mxu0 0.0
    %729 = vmatpush2.msra.mxu0 0.0
    %730 = vmatprep.subr.mxu0 0.0
    %731 = vmatpush2.msra.mxu0 0.0
    %732 = vmatprep.subr.mxu0 0.0
    %733 = vmatpush2.msra.mxu0 0.0
    %734 = vmatprep.subr.mxu0 0.0
    %735 = vmatpush2.msra.mxu0 0.0
    %736 = vmatprep.subr.mxu0 0.0
    %737 = vmatpush2.msra.mxu0 0.0
    %738 = vmatprep.subr.mxu0 0.0
    %739 = vmatpush2.msra.mxu0 0.0
    %740 = vmatprep.mubr.f32.mxu0 0.0
    %741 = vmatmul.mubr.f32.gmra.mxu0 %v435
    %v742 = vpop.f32.mrf.mxu0
    %v743 = vadd.f32 %v292, %v742
    %v744 = vpop.f32.mrf.mxu0
    %v745 = vadd.f32 %v296, %v744
    %746 = vdwg.mxu0
    %747 = vmatprep.subr.mxu0 0.0
    %748 = vmatpush1.msra.mxu0 0.0
    %749 = vmatprep.subr.mxu0 0.0
    %750 = vmatpush1.msra.mxu0 0.0
    %751 = vmatprep.subr.mxu0 0.0
    %752 = vmatpush1.msra.mxu0 0.0
    %753 = vmatprep.subr.mxu0 0.0
    %754 = vmatpush1.msra.mxu0 0.0
    %755 = vmatprep.subr.mxu0 0.0
    %756 = vmatpush1.msra.mxu0 0.0
    %757 = vmatprep.subr.mxu0 0.0
    %758 = vmatpush1.msra.mxu0 0.0
    %759 = vmatprep.subr.mxu0 0.0
    %760 = vmatpush1.msra.mxu0 0.0
    %761 = vmatprep.subr.mxu0 0.0
    %762 = vmatpush1.msra.mxu0 0.0
    %763 = vmatprep.subr.mxu0 0.0
    %764 = vmatpush1.msra.mxu0 0.0
    %765 = vmatprep.subr.mxu0 0.0
    %766 = vmatpush1.msra.mxu0 0.0
    %767 = vmatprep.subr.mxu0 %v460
    %768 = vmatpush1.msra.mxu0 %v457
    %769 = vmatprep.subr.mxu0 %v208
    %770 = vmatpush1.msra.mxu0 %v207
    %771 = vmatprep.subr.mxu0 %v176
    %772 = vmatpush1.msra.mxu0 %v175
    %773 = vmatprep.subr.mxu0 %v144
    %774 = vmatpush1.msra.mxu0 %v143
    %775 = vmatprep.subr.mxu0 %v112
    %776 = vmatpush1.msra.mxu0 %v111
    %777 = vmatprep.subr.mxu0 %v80
    %778 = vmatpush1.msra.mxu0 %v79
    %779 = vmatprep.subr.mxu0 0.0
    %780 = vmatpush2.msra.mxu0 0.0
    %781 = vmatprep.subr.mxu0 0.0
    %782 = vmatpush2.msra.mxu0 0.0
    %783 = vmatprep.subr.mxu0 0.0
    %784 = vmatpush2.msra.mxu0 0.0
    %785 = vmatprep.subr.mxu0 0.0
    %786 = vmatpush2.msra.mxu0 0.0
    %787 = vmatprep.subr.mxu0 0.0
    %788 = vmatpush2.msra.mxu0 0.0
    %789 = vmatprep.subr.mxu0 0.0
    %790 = vmatpush2.msra.mxu0 0.0
    %791 = vmatprep.subr.mxu0 0.0
    %792 = vmatpush2.msra.mxu0 0.0
    %793 = vmatprep.subr.mxu0 0.0
    %794 = vmatpush2.msra.mxu0 0.0
    %795 = vmatprep.subr.mxu0 0.0
    %796 = vmatpush2.msra.mxu0 0.0
    %797 = vmatprep.subr.mxu0 0.0
    %798 = vmatpush2.msra.mxu0 0.0
    %799 = vmatprep.subr.mxu0 0.0
    %800 = vmatpush2.msra.mxu0 0.0
    %801 = vmatprep.subr.mxu0 0.0
    %802 = vmatpush2.msra.mxu0 0.0
    %803 = vmatprep.subr.mxu0 0.0
    %804 = vmatpush2.msra.mxu0 0.0
    %805 = vmatprep.subr.mxu0 0.0
    %806 = vmatpush2.msra.mxu0 0.0
    %807 = vmatprep.subr.mxu0 0.0
    %808 = vmatpush2.msra.mxu0 0.0
    %809 = vmatprep.subr.mxu0 0.0
    %810 = vmatpush2.msra.mxu0 0.0
    %811 = vmatprep.mubr.f32.mxu0 0.0
    %812 = vmatmul.mubr.f32.gmra.mxu0 %v435
    %v813 = vpop.f32.mrf.mxu0
    %v814 = vadd.f32 %v300, %v813
    %v815 = vpop.f32.mrf.mxu0
    %v816 = vadd.f32 %v304, %v815
    %817 = vdwg.mxu0
    %818 = vmatprep.subr.mxu0 0.0
    %819 = vmatpush1.msra.mxu0 0.0
    %820 = vmatprep.subr.mxu0 0.0
    %821 = vmatpush1.msra.mxu0 0.0
    %822 = vmatprep.subr.mxu0 0.0
    %823 = vmatpush1.msra.mxu0 0.0
    %824 = vmatprep.subr.mxu0 0.0
    %825 = vmatpush1.msra.mxu0 0.0
    %826 = vmatprep.subr.mxu0 0.0
    %827 = vmatpush1.msra.mxu0 0.0
    %828 = vmatprep.subr.mxu0 0.0
    %829 = vmatpush1.msra.mxu0 0.0
    %830 = vmatprep.subr.mxu0 0.0
    %831 = vmatpush1.msra.mxu0 0.0
    %832 = vmatprep.subr.mxu0 0.0
    %833 = vmatpush1.msra.mxu0 0.0
    %834 = vmatprep.subr.mxu0 0.0
    %835 = vmatpush1.msra.mxu0 0.0
    %836 = vmatprep.subr.mxu0 0.0
    %837 = vmatpush1.msra.mxu0 0.0
    %838 = vmatprep.subr.mxu0 %v466
    %839 = vmatpush1.msra.mxu0 %v463
    %840 = vmatprep.subr.mxu0 %v210
    %841 = vmatpush1.msra.mxu0 %v209
    %842 = vmatprep.subr.mxu0 %v178
    %843 = vmatpush1.msra.mxu0 %v177
    %844 = vmatprep.subr.mxu0 %v146
    %845 = vmatpush1.msra.mxu0 %v145
    %846 = vmatprep.subr.mxu0 %v114
    %847 = vmatpush1.msra.mxu0 %v113
    %848 = vmatprep.subr.mxu0 %v82
    %849 = vmatpush1.msra.mxu0 %v81
    %850 = vmatprep.subr.mxu0 0.0
    %851 = vmatpush2.msra.mxu0 0.0
    %852 = vmatprep.subr.mxu0 0.0
    %853 = vmatpush2.msra.mxu0 0.0
    %854 = vmatprep.subr.mxu0 0.0
    %855 = vmatpush2.msra.mxu0 0.0
    %856 = vmatprep.subr.mxu0 0.0
    %857 = vmatpush2.msra.mxu0 0.0
    %858 = vmatprep.subr.mxu0 0.0
    %859 = vmatpush2.msra.mxu0 0.0
    %860 = vmatprep.subr.mxu0 0.0
    %861 = vmatpush2.msra.mxu0 0.0
    %862 = vmatprep.subr.mxu0 0.0
    %863 = vmatpush2.msra.mxu0 0.0
    %864 = vmatprep.subr.mxu0 0.0
    %865 = vmatpush2.msra.mxu0 0.0
    %866 = vmatprep.subr.mxu0 0.0
    %867 = vmatpush2.msra.mxu0 0.0
    %868 = vmatprep.subr.mxu0 0.0
    %869 = vmatpush2.msra.mxu0 0.0
    %870 = vmatprep.subr.mxu0 0.0
    %871 = vmatpush2.msra.mxu0 0.0
    %872 = vmatprep.subr.mxu0 0.0
    %873 = vmatpush2.msra.mxu0 0.0
    %874 = vmatprep.subr.mxu0 0.0
    %875 = vmatpush2.msra.mxu0 0.0
    %876 = vmatprep.subr.mxu0 0.0
    %877 = vmatpush2.msra.mxu0 0.0
    %878 = vmatprep.subr.mxu0 0.0
    %879 = vmatpush2.msra.mxu0 0.0
    %880 = vmatprep.subr.mxu0 0.0
    %881 = vmatpush2.msra.mxu0 0.0
    %882 = vmatprep.mubr.f32.mxu0 0.0
    %883 = vmatmul.mubr.f32.gmra.mxu0 %v435
    %v884 = vpop.f32.mrf.mxu0
    %v885 = vadd.f32 %v308, %v884
    %v886 = vpop.f32.mrf.mxu0
    %v887 = vadd.f32 %v312, %v886
    %888 = vdwg.mxu0
    %889 = vmatprep.subr.mxu0 0.0
    %890 = vmatpush1.msra.mxu0 0.0
    %891 = vmatprep.subr.mxu0 0.0
    %892 = vmatpush1.msra.mxu0 0.0
    %893 = vmatprep.subr.mxu0 0.0
    %894 = vmatpush1.msra.mxu0 0.0
    %895 = vmatprep.subr.mxu0 0.0
    %896 = vmatpush1.msra.mxu0 0.0
    %897 = vmatprep.subr.mxu0 0.0
    %898 = vmatpush1.msra.mxu0 0.0
    %899 = vmatprep.subr.mxu0 0.0
    %900 = vmatpush1.msra.mxu0 0.0
    %901 = vmatprep.subr.mxu0 0.0
    %902 = vmatpush1.msra.mxu0 0.0
    %903 = vmatprep.subr.mxu0 0.0
    %904 = vmatpush1.msra.mxu0 0.0
    %905 = vmatprep.subr.mxu0 0.0
    %906 = vmatpush1.msra.mxu0 0.0
    %907 = vmatprep.subr.mxu0 0.0
    %908 = vmatpush1.msra.mxu0 0.0
    %909 = vmatprep.subr.mxu0 %v472
    %910 = vmatpush1.msra.mxu0 %v469
    %911 = vmatprep.subr.mxu0 %v212
    %912 = vmatpush1.msra.mxu0 %v211
    %913 = vmatprep.subr.mxu0 %v180
    %914 = vmatpush1.msra.mxu0 %v179
    %915 = vmatprep.subr.mxu0 %v148
    %916 = vmatpush1.msra.mxu0 %v147
    %917 = vmatprep.subr.mxu0 %v116
    %918 = vmatpush1.msra.mxu0 %v115
    %919 = vmatprep.subr.mxu0 %v84
    %920 = vmatpush1.msra.mxu0 %v83
    %921 = vmatprep.subr.mxu0 0.0
    %922 = vmatpush2.msra.mxu0 0.0
    %923 = vmatprep.subr.mxu0 0.0
    %924 = vmatpush2.msra.mxu0 0.0
    %925 = vmatprep.subr.mxu0 0.0
    %926 = vmatpush2.msra.mxu0 0.0
    %927 = vmatprep.subr.mxu0 0.0
    %928 = vmatpush2.msra.mxu0 0.0
    %929 = vmatprep.subr.mxu0 0.0
    %930 = vmatpush2.msra.mxu0 0.0
    %931 = vmatprep.subr.mxu0 0.0
    %932 = vmatpush2.msra.mxu0 0.0
    %933 = vmatprep.subr.mxu0 0.0
    %934 = vmatpush2.msra.mxu0 0.0
    %935 = vmatprep.subr.mxu0 0.0
    %936 = vmatpush2.msra.mxu0 0.0
    %937 = vmatprep.subr.mxu0 0.0
    %938 = vmatpush2.msra.mxu0 0.0
    %939 = vmatprep.subr.mxu0 0.0
    %940 = vmatpush2.msra.mxu0 0.0
    %941 = vmatprep.subr.mxu0 0.0
    %942 = vmatpush2.msra.mxu0 0.0
    %943 = vmatprep.subr.mxu0 0.0
    %944 = vmatpush2.msra.mxu0 0.0
    %945 = vmatprep.subr.mxu0 0.0
    %946 = vmatpush2.msra.mxu0 0.0
    %947 = vmatprep.subr.mxu0 0.0
    %948 = vmatpush2.msra.mxu0 0.0
    %949 = vmatprep.subr.mxu0 0.0
    %950 = vmatpush2.msra.mxu0 0.0
    %951 = vmatprep.subr.mxu0 0.0
    %952 = vmatpush2.msra.mxu0 0.0
    %953 = vmatprep.mubr.f32.mxu0 0.0
    %954 = vmatmul.mubr.f32.gmra.mxu0 %v435
    %v955 = vpop.f32.mrf.mxu0
    %v956 = vadd.f32 %v316, %v955
    %v957 = vpop.f32.mrf.mxu0
    %v958 = vadd.f32 %v320, %v957
    %959 = vdwg.mxu0
    %960 = vmatprep.subr.mxu0 0.0
    %961 = vmatpush1.msra.mxu0 0.0
    %962 = vmatprep.subr.mxu0 0.0
    %963 = vmatpush1.msra.mxu0 0.0
    %964 = vmatprep.subr.mxu0 0.0
    %965 = vmatpush1.msra.mxu0 0.0
    %966 = vmatprep.subr.mxu0 0.0
    %967 = vmatpush1.msra.mxu0 0.0
    %968 = vmatprep.subr.mxu0 0.0
    %969 = vmatpush1.msra.mxu0 0.0
    %970 = vmatprep.subr.mxu0 0.0
    %971 = vmatpush1.msra.mxu0 0.0
    %972 = vmatprep.subr.mxu0 0.0
    %973 = vmatpush1.msra.mxu0 0.0
    %974 = vmatprep.subr.mxu0 0.0
    %975 = vmatpush1.msra.mxu0 0.0
    %976 = vmatprep.subr.mxu0 0.0
    %977 = vmatpush1.msra.mxu0 0.0
    %978 = vmatprep.subr.mxu0 0.0
    %979 = vmatpush1.msra.mxu0 0.0
    %980 = vmatprep.subr.mxu0 %v478
    %981 = vmatpush1.msra.mxu0 %v475
    %982 = vmatprep.subr.mxu0 %v214
    %983 = vmatpush1.msra.mxu0 %v213
    %984 = vmatprep.subr.mxu0 %v182
    %985 = vmatpush1.msra.mxu0 %v181
    %986 = vmatprep.subr.mxu0 %v150
    %987 = vmatpush1.msra.mxu0 %v149
    %988 = vmatprep.subr.mxu0 %v118
    %989 = vmatpush1.msra.mxu0 %v117
    %990 = vmatprep.subr.mxu0 %v86
    %991 = vmatpush1.msra.mxu0 %v85
    %992 = vmatprep.subr.mxu0 0.0
    %993 = vmatpush2.msra.mxu0 0.0
    %994 = vmatprep.subr.mxu0 0.0
    %995 = vmatpush2.msra.mxu0 0.0
    %996 = vmatprep.subr.mxu0 0.0
    %997 = vmatpush2.msra.mxu0 0.0
    %998 = vmatprep.subr.mxu0 0.0
    %999 = vmatpush2.msra.mxu0 0.0
    %1000 = vmatprep.subr.mxu0 0.0
    %1001 = vmatpush2.msra.mxu0 0.0
    %1002 = vmatprep.subr.mxu0 0.0
    %1003 = vmatpush2.msra.mxu0 0.0
    %1004 = vmatprep.subr.mxu0 0.0
    %1005 = vmatpush2.msra.mxu0 0.0
    %1006 = vmatprep.subr.mxu0 0.0
    %1007 = vmatpush2.msra.mxu0 0.0
    %1008 = vmatprep.subr.mxu0 0.0
    %1009 = vmatpush2.msra.mxu0 0.0
    %1010 = vmatprep.subr.mxu0 0.0
    %1011 = vmatpush2.msra.mxu0 0.0
    %1012 = vmatprep.subr.mxu0 0.0
    %1013 = vmatpush2.msra.mxu0 0.0
    %1014 = vmatprep.subr.mxu0 0.0
    %1015 = vmatpush2.msra.mxu0 0.0
    %1016 = vmatprep.subr.mxu0 0.0
    %1017 = vmatpush2.msra.mxu0 0.0
    %1018 = vmatprep.subr.mxu0 0.0
    %1019 = vmatpush2.msra.mxu0 0.0
    %1020 = vmatprep.subr.mxu0 0.0
    %1021 = vmatpush2.msra.mxu0 0.0
    %1022 = vmatprep.subr.mxu0 0.0
    %1023 = vmatpush2.msra.mxu0 0.0
    %1024 = vmatprep.mubr.f32.mxu0 0.0
    %1025 = vmatmul.mubr.f32.gmra.mxu0 %v435
    %v1026 = vpop.f32.mrf.mxu0
    %v1027 = vadd.f32 %v324, %v1026
    %v1028 = vpop.f32.mrf.mxu0
    %v1029 = vadd.f32 %v328, %v1028
    %1030 = vdwg.mxu0
    %1031 = vmatprep.subr.mxu0 0.0
    %1032 = vmatpush1.msra.mxu0 0.0
    %1033 = vmatprep.subr.mxu0 0.0
    %1034 = vmatpush1.msra.mxu0 0.0
    %1035 = vmatprep.subr.mxu0 0.0
    %1036 = vmatpush1.msra.mxu0 0.0
    %1037 = vmatprep.subr.mxu0 0.0
    %1038 = vmatpush1.msra.mxu0 0.0
    %1039 = vmatprep.subr.mxu0 0.0
    %1040 = vmatpush1.msra.mxu0 0.0
    %1041 = vmatprep.subr.mxu0 0.0
    %1042 = vmatpush1.msra.mxu0 0.0
    %1043 = vmatprep.subr.mxu0 0.0
    %1044 = vmatpush1.msra.mxu0 0.0
    %1045 = vmatprep.subr.mxu0 0.0
    %1046 = vmatpush1.msra.mxu0 0.0
    %1047 = vmatprep.subr.mxu0 0.0
    %1048 = vmatpush1.msra.mxu0 0.0
    %1049 = vmatprep.subr.mxu0 0.0
    %1050 = vmatpush1.msra.mxu0 0.0
    %1051 = vmatprep.subr.mxu0 %v484
    %1052 = vmatpush1.msra.mxu0 %v481
    %1053 = vmatprep.subr.mxu0 %v216
    %1054 = vmatpush1.msra.mxu0 %v215
    %1055 = vmatprep.subr.mxu0 %v184
    %1056 = vmatpush1.msra.mxu0 %v183
    %1057 = vmatprep.subr.mxu0 %v152
    %1058 = vmatpush1.msra.mxu0 %v151
    %1059 = vmatprep.subr.mxu0 %v120
    %1060 = vmatpush1.msra.mxu0 %v119
    %1061 = vmatprep.subr.mxu0 %v88
    %1062 = vmatpush1.msra.mxu0 %v87
    %1063 = vmatprep.subr.mxu0 0.0
    %1064 = vmatpush2.msra.mxu0 0.0
    %1065 = vmatprep.subr.mxu0 0.0
    %1066 = vmatpush2.msra.mxu0 0.0
    %1067 = vmatprep.subr.mxu0 0.0
    %1068 = vmatpush2.msra.mxu0 0.0
    %1069 = vmatprep.subr.mxu0 0.0
    %1070 = vmatpush2.msra.mxu0 0.0
    %1071 = vmatprep.subr.mxu0 0.0
    %1072 = vmatpush2.msra.mxu0 0.0
    %1073 = vmatprep.subr.mxu0 0.0
    %1074 = vmatpush2.msra.mxu0 0.0
    %1075 = vmatprep.subr.mxu0 0.0
    %1076 = vmatpush2.msra.mxu0 0.0
    %1077 = vmatprep.subr.mxu0 0.0
    %1078 = vmatpush2.msra.mxu0 0.0
    %1079 = vmatprep.subr.mxu0 0.0
    %1080 = vmatpush2.msra.mxu0 0.0
    %1081 = vmatprep.subr.mxu0 0.0
    %1082 = vmatpush2.msra.mxu0 0.0
    %1083 = vmatprep.subr.mxu0 0.0
    %1084 = vmatpush2.msra.mxu0 0.0
    %1085 = vmatprep.subr.mxu0 0.0
    %1086 = vmatpush2.msra.mxu0 0.0
    %1087 = vmatprep.subr.mxu0 0.0
    %1088 = vmatpush2.msra.mxu0 0.0
    %1089 = vmatprep.subr.mxu0 0.0
    %1090 = vmatpush2.msra.mxu0 0.0
    %1091 = vmatprep.subr.mxu0 0.0
    %1092 = vmatpush2.msra.mxu0 0.0
    %1093 = vmatprep.subr.mxu0 0.0
    %1094 = vmatpush2.msra.mxu0 0.0
    %1095 = vmatprep.mubr.f32.mxu0 0.0
    %1096 = vmatmul.mubr.f32.gmra.mxu0 %v435
    %v1097 = vpop.f32.mrf.mxu0
    %v1098 = vadd.f32 %v332, %v1097
    %v1099 = vpop.f32.mrf.mxu0
    %v1100 = vadd.f32 %v336, %v1099
    %1101 = vdwg.mxu0
    %1102 = vmatprep.subr.mxu0 0.0
    %1103 = vmatpush1.msra.mxu0 0.0
    %1104 = vmatprep.subr.mxu0 0.0
    %1105 = vmatpush1.msra.mxu0 0.0
    %1106 = vmatprep.subr.mxu0 0.0
    %1107 = vmatpush1.msra.mxu0 0.0
    %1108 = vmatprep.subr.mxu0 0.0
    %1109 = vmatpush1.msra.mxu0 0.0
    %1110 = vmatprep.subr.mxu0 0.0
    %1111 = vmatpush1.msra.mxu0 0.0
    %1112 = vmatprep.subr.mxu0 0.0
    %1113 = vmatpush1.msra.mxu0 0.0
    %1114 = vmatprep.subr.mxu0 0.0
    %1115 = vmatpush1.msra.mxu0 0.0
    %1116 = vmatprep.subr.mxu0 0.0
    %1117 = vmatpush1.msra.mxu0 0.0
    %1118 = vmatprep.subr.mxu0 0.0
    %1119 = vmatpush1.msra.mxu0 0.0
    %1120 = vmatprep.subr.mxu0 0.0
    %1121 = vmatpush1.msra.mxu0 0.0
    %1122 = vmatprep.subr.mxu0 %v490
    %1123 = vmatpush1.msra.mxu0 %v487
    %1124 = vmatprep.subr.mxu0 %v218
    %1125 = vmatpush1.msra.mxu0 %v217
    %1126 = vmatprep.subr.mxu0 %v186
    %1127 = vmatpush1.msra.mxu0 %v185
    %1128 = vmatprep.subr.mxu0 %v154
    %1129 = vmatpush1.msra.mxu0 %v153
    %1130 = vmatprep.subr.mxu0 %v122
    %1131 = vmatpush1.msra.mxu0 %v121
    %1132 = vmatprep.subr.mxu0 %v90
    %1133 = vmatpush1.msra.mxu0 %v89
    %1134 = vmatprep.subr.mxu0 0.0
    %1135 = vmatpush2.msra.mxu0 0.0
    %1136 = vmatprep.subr.mxu0 0.0
    %1137 = vmatpush2.msra.mxu0 0.0
    %1138 = vmatprep.subr.mxu0 0.0
    %1139 = vmatpush2.msra.mxu0 0.0
    %1140 = vmatprep.subr.mxu0 0.0
    %1141 = vmatpush2.msra.mxu0 0.0
    %1142 = vmatprep.subr.mxu0 0.0
    %1143 = vmatpush2.msra.mxu0 0.0
    %1144 = vmatprep.subr.mxu0 0.0
    %1145 = vmatpush2.msra.mxu0 0.0
    %1146 = vmatprep.subr.mxu0 0.0
    %1147 = vmatpush2.msra.mxu0 0.0
    %1148 = vmatprep.subr.mxu0 0.0
    %1149 = vmatpush2.msra.mxu0 0.0
    %1150 = vmatprep.subr.mxu0 0.0
    %1151 = vmatpush2.msra.mxu0 0.0
    %1152 = vmatprep.subr.mxu0 0.0
    %1153 = vmatpush2.msra.mxu0 0.0
    %1154 = vmatprep.subr.mxu0 0.0
    %1155 = vmatpush2.msra.mxu0 0.0
    %1156 = vmatprep.subr.mxu0 0.0
    %1157 = vmatpush2.msra.mxu0 0.0
    %1158 = vmatprep.subr.mxu0 0.0
    %1159 = vmatpush2.msra.mxu0 0.0
    %1160 = vmatprep.subr.mxu0 0.0
    %1161 = vmatpush2.msra.mxu0 0.0
    %1162 = vmatprep.subr.mxu0 0.0
    %1163 = vmatpush2.msra.mxu0 0.0
    %1164 = vmatprep.subr.mxu0 0.0
    %1165 = vmatpush2.msra.mxu0 0.0
    %1166 = vmatprep.mubr.f32.mxu0 0.0
    %1167 = vmatmul.mubr.f32.gmra.mxu0 %v435
    %v1168 = vpop.f32.mrf.mxu0
    %v1169 = vadd.f32 %v340, %v1168
    %v1170 = vpop.f32.mrf.mxu0
    %v1171 = vadd.f32 %v344, %v1170
    %1172 = vdwg.mxu0
    %1173 = vmatprep.subr.mxu0 0.0
    %1174 = vmatpush1.msra.mxu0 0.0
    %1175 = vmatprep.subr.mxu0 0.0
    %1176 = vmatpush1.msra.mxu0 0.0
    %1177 = vmatprep.subr.mxu0 0.0
    %1178 = vmatpush1.msra.mxu0 0.0
    %1179 = vmatprep.subr.mxu0 0.0
    %1180 = vmatpush1.msra.mxu0 0.0
    %1181 = vmatprep.subr.mxu0 0.0
    %1182 = vmatpush1.msra.mxu0 0.0
    %1183 = vmatprep.subr.mxu0 0.0
    %1184 = vmatpush1.msra.mxu0 0.0
    %1185 = vmatprep.subr.mxu0 0.0
    %1186 = vmatpush1.msra.mxu0 0.0
    %1187 = vmatprep.subr.mxu0 0.0
    %1188 = vmatpush1.msra.mxu0 0.0
    %1189 = vmatprep.subr.mxu0 0.0
    %1190 = vmatpush1.msra.mxu0 0.0
    %1191 = vmatprep.subr.mxu0 0.0
    %1192 = vmatpush1.msra.mxu0 0.0
    %1193 = vmatprep.subr.mxu0 %v496
    %1194 = vmatpush1.msra.mxu0 %v493
    %1195 = vmatprep.subr.mxu0 %v220
    %1196 = vmatpush1.msra.mxu0 %v219
    %1197 = vmatprep.subr.mxu0 %v188
    %1198 = vmatpush1.msra.mxu0 %v187
    %1199 = vmatprep.subr.mxu0 %v156
    %1200 = vmatpush1.msra.mxu0 %v155
    %1201 = vmatprep.subr.mxu0 %v124
    %1202 = vmatpush1.msra.mxu0 %v123
    %1203 = vmatprep.subr.mxu0 %v92
    %1204 = vmatpush1.msra.mxu0 %v91
    %1205 = vmatprep.subr.mxu0 0.0
    %1206 = vmatpush2.msra.mxu0 0.0
    %1207 = vmatprep.subr.mxu0 0.0
    %1208 = vmatpush2.msra.mxu0 0.0
    %1209 = vmatprep.subr.mxu0 0.0
    %1210 = vmatpush2.msra.mxu0 0.0
    %1211 = vmatprep.subr.mxu0 0.0
    %1212 = vmatpush2.msra.mxu0 0.0
    %1213 = vmatprep.subr.mxu0 0.0
    %1214 = vmatpush2.msra.mxu0 0.0
    %1215 = vmatprep.subr.mxu0 0.0
    %1216 = vmatpush2.msra.mxu0 0.0
    %1217 = vmatprep.subr.mxu0 0.0
    %1218 = vmatpush2.msra.mxu0 0.0
    %1219 = vmatprep.subr.mxu0 0.0
    %1220 = vmatpush2.msra.mxu0 0.0
    %1221 = vmatprep.subr.mxu0 0.0
    %1222 = vmatpush2.msra.mxu0 0.0
    %1223 = vmatprep.subr.mxu0 0.0
    %1224 = vmatpush2.msra.mxu0 0.0
    %1225 = vmatprep.subr.mxu0 0.0
    %1226 = vmatpush2.msra.mxu0 0.0
    %1227 = vmatprep.subr.mxu0 0.0
    %1228 = vmatpush2.msra.mxu0 0.0
    %1229 = vmatprep.subr.mxu0 0.0
    %1230 = vmatpush2.msra.mxu0 0.0
    %1231 = vmatprep.subr.mxu0 0.0
    %1232 = vmatpush2.msra.mxu0 0.0
    %1233 = vmatprep.subr.mxu0 0.0
    %1234 = vmatpush2.msra.mxu0 0.0
    %1235 = vmatprep.subr.mxu0 0.0
    %1236 = vmatpush2.msra.mxu0 0.0
    %1237 = vmatprep.mubr.f32.mxu0 0.0
    %1238 = vmatmul.mubr.f32.gmra.mxu0 %v435
    %v1239 = vpop.f32.mrf.mxu0
    %v1240 = vadd.f32 %v348, %v1239
    %v1241 = vpop.f32.mrf.mxu0
    %v1242 = vadd.f32 %v352, %v1241
    %1243 = vdwg.mxu0
    %1244 = vmatprep.subr.mxu0 0.0
    %1245 = vmatpush1.msra.mxu0 0.0
    %1246 = vmatprep.subr.mxu0 0.0
    %1247 = vmatpush1.msra.mxu0 0.0
    %1248 = vmatprep.subr.mxu0 0.0
    %1249 = vmatpush1.msra.mxu0 0.0
    %1250 = vmatprep.subr.mxu0 0.0
    %1251 = vmatpush1.msra.mxu0 0.0
    %1252 = vmatprep.subr.mxu0 0.0
    %1253 = vmatpush1.msra.mxu0 0.0
    %1254 = vmatprep.subr.mxu0 0.0
    %1255 = vmatpush1.msra.mxu0 0.0
    %1256 = vmatprep.subr.mxu0 0.0
    %1257 = vmatpush1.msra.mxu0 0.0
    %1258 = vmatprep.subr.mxu0 0.0
    %1259 = vmatpush1.msra.mxu0 0.0
    %1260 = vmatprep.subr.mxu0 0.0
    %1261 = vmatpush1.msra.mxu0 0.0
    %1262 = vmatprep.subr.mxu0 0.0
    %1263 = vmatpush1.msra.mxu0 0.0
    %1264 = vmatprep.subr.mxu0 %v502
    %1265 = vmatpush1.msra.mxu0 %v499
    %1266 = vmatprep.subr.mxu0 %v222
    %1267 = vmatpush1.msra.mxu0 %v221
    %1268 = vmatprep.subr.mxu0 %v190
    %1269 = vmatpush1.msra.mxu0 %v189
    %1270 = vmatprep.subr.mxu0 %v158
    %1271 = vmatpush1.msra.mxu0 %v157
    %1272 = vmatprep.subr.mxu0 %v126
    %1273 = vmatpush1.msra.mxu0 %v125
    %1274 = vmatprep.subr.mxu0 %v94
    %1275 = vmatpush1.msra.mxu0 %v93
    %1276 = vmatprep.subr.mxu0 0.0
    %1277 = vmatpush2.msra.mxu0 0.0
    %1278 = vmatprep.subr.mxu0 0.0
    %1279 = vmatpush2.msra.mxu0 0.0
    %1280 = vmatprep.subr.mxu0 0.0
    %1281 = vmatpush2.msra.mxu0 0.0
    %1282 = vmatprep.subr.mxu0 0.0
    %1283 = vmatpush2.msra.mxu0 0.0
    %1284 = vmatprep.subr.mxu0 0.0
    %1285 = vmatpush2.msra.mxu0 0.0
    %1286 = vmatprep.subr.mxu0 0.0
    %1287 = vmatpush2.msra.mxu0 0.0
    %1288 = vmatprep.subr.mxu0 0.0
    %1289 = vmatpush2.msra.mxu0 0.0
    %1290 = vmatprep.subr.mxu0 0.0
    %1291 = vmatpush2.msra.mxu0 0.0
    %1292 = vmatprep.subr.mxu0 0.0
    %1293 = vmatpush2.msra.mxu0 0.0
    %1294 = vmatprep.subr.mxu0 0.0
    %1295 = vmatpush2.msra.mxu0 0.0
    %1296 = vmatprep.subr.mxu0 0.0
    %1297 = vmatpush2.msra.mxu0 0.0
    %1298 = vmatprep.subr.mxu0 0.0
    %1299 = vmatpush2.msra.mxu0 0.0
    %1300 = vmatprep.subr.mxu0 0.0
    %1301 = vmatpush2.msra.mxu0 0.0
    %1302 = vmatprep.subr.mxu0 0.0
    %1303 = vmatpush2.msra.mxu0 0.0
    %1304 = vmatprep.subr.mxu0 0.0
    %1305 = vmatpush2.msra.mxu0 0.0
    %1306 = vmatprep.subr.mxu0 0.0
    %1307 = vmatpush2.msra.mxu0 0.0
    %1308 = vmatprep.mubr.f32.mxu0 0.0
    %1309 = vmatmul.mubr.f32.gmra.mxu0 %v435
    %v1310 = vpop.f32.mrf.mxu0
    %v1311 = vadd.f32 %v356, %v1310
    %v1312 = vpop.f32.mrf.mxu0
    %v1313 = vadd.f32 %v360, %v1312
    %1314 = vdwg.mxu0
    %1315 = vmatprep.subr.mxu0 0.0
    %1316 = vmatpush1.msra.mxu0 0.0
    %1317 = vmatprep.subr.mxu0 0.0
    %1318 = vmatpush1.msra.mxu0 0.0
    %1319 = vmatprep.subr.mxu0 0.0
    %1320 = vmatpush1.msra.mxu0 0.0
    %1321 = vmatprep.subr.mxu0 0.0
    %1322 = vmatpush1.msra.mxu0 0.0
    %1323 = vmatprep.subr.mxu0 0.0
    %1324 = vmatpush1.msra.mxu0 0.0
    %1325 = vmatprep.subr.mxu0 0.0
    %1326 = vmatpush1.msra.mxu0 0.0
    %1327 = vmatprep.subr.mxu0 0.0
    %1328 = vmatpush1.msra.mxu0 0.0
    %1329 = vmatprep.subr.mxu0 0.0
    %1330 = vmatpush1.msra.mxu0 0.0
    %1331 = vmatprep.subr.mxu0 0.0
    %1332 = vmatpush1.msra.mxu0 0.0
    %1333 = vmatprep.subr.mxu0 0.0
    %1334 = vmatpush1.msra.mxu0 0.0
    %1335 = vmatprep.subr.mxu0 %v508
    %1336 = vmatpush1.msra.mxu0 %v505
    %1337 = vmatprep.subr.mxu0 %v224
    %1338 = vmatpush1.msra.mxu0 %v223
    %1339 = vmatprep.subr.mxu0 %v192
    %1340 = vmatpush1.msra.mxu0 %v191
    %1341 = vmatprep.subr.mxu0 %v160
    %1342 = vmatpush1.msra.mxu0 %v159
    %1343 = vmatprep.subr.mxu0 %v128
    %1344 = vmatpush1.msra.mxu0 %v127
    %1345 = vmatprep.subr.mxu0 %v96
    %1346 = vmatpush1.msra.mxu0 %v95
    %1347 = vmatprep.subr.mxu0 0.0
    %1348 = vmatpush2.msra.mxu0 0.0
    %1349 = vmatprep.subr.mxu0 0.0
    %1350 = vmatpush2.msra.mxu0 0.0
    %1351 = vmatprep.subr.mxu0 0.0
    %1352 = vmatpush2.msra.mxu0 0.0
    %1353 = vmatprep.subr.mxu0 0.0
    %1354 = vmatpush2.msra.mxu0 0.0
    %1355 = vmatprep.subr.mxu0 0.0
    %1356 = vmatpush2.msra.mxu0 0.0
    %1357 = vmatprep.subr.mxu0 0.0
    %1358 = vmatpush2.msra.mxu0 0.0
    %1359 = vmatprep.subr.mxu0 0.0
    %1360 = vmatpush2.msra.mxu0 0.0
    %1361 = vmatprep.subr.mxu0 0.0
    %1362 = vmatpush2.msra.mxu0 0.0
    %1363 = vmatprep.subr.mxu0 0.0
    %1364 = vmatpush2.msra.mxu0 0.0
    %1365 = vmatprep.subr.mxu0 0.0
    %1366 = vmatpush2.msra.mxu0 0.0
    %1367 = vmatprep.subr.mxu0 0.0
    %1368 = vmatpush2.msra.mxu0 0.0
    %1369 = vmatprep.subr.mxu0 0.0
    %1370 = vmatpush2.msra.mxu0 0.0
    %1371 = vmatprep.subr.mxu0 0.0
    %1372 = vmatpush2.msra.mxu0 0.0
    %1373 = vmatprep.subr.mxu0 0.0
    %1374 = vmatpush2.msra.mxu0 0.0
    %1375 = vmatprep.subr.mxu0 0.0
    %1376 = vmatpush2.msra.mxu0 0.0
    %1377 = vmatprep.subr.mxu0 0.0
    %1378 = vmatpush2.msra.mxu0 0.0
    %1379 = vmatprep.mubr.f32.mxu0 0.0
    %1380 = vmatmul.mubr.f32.gmra.mxu0 %v435
    %v1381 = vpop.f32.mrf.mxu0
    %v1382 = vadd.f32 %v364, %v1381
    %v1383 = vpop.f32.mrf.mxu0
    %v1384 = vadd.f32 %v368, %v1383
    %1385 = vdwg.mxu0
    %1386 = vmatprep.subr.mxu0 0.0
    %1387 = vmatpush1.msra.mxu0 0.0
    %1388 = vmatprep.subr.mxu0 0.0
    %1389 = vmatpush1.msra.mxu0 0.0
    %1390 = vmatprep.subr.mxu0 0.0
    %1391 = vmatpush1.msra.mxu0 0.0
    %1392 = vmatprep.subr.mxu0 0.0
    %1393 = vmatpush1.msra.mxu0 0.0
    %1394 = vmatprep.subr.mxu0 0.0
    %1395 = vmatpush1.msra.mxu0 0.0
    %1396 = vmatprep.subr.mxu0 0.0
    %1397 = vmatpush1.msra.mxu0 0.0
    %1398 = vmatprep.subr.mxu0 0.0
    %1399 = vmatpush1.msra.mxu0 0.0
    %1400 = vmatprep.subr.mxu0 0.0
    %1401 = vmatpush1.msra.mxu0 0.0
    %1402 = vmatprep.subr.mxu0 0.0
    %1403 = vmatpush1.msra.mxu0 0.0
    %1404 = vmatprep.subr.mxu0 0.0
    %1405 = vmatpush1.msra.mxu0 0.0
    %1406 = vmatprep.subr.mxu0 %v514
    %1407 = vmatpush1.msra.mxu0 %v511
    %1408 = vmatprep.subr.mxu0 %v226
    %1409 = vmatpush1.msra.mxu0 %v225
    %1410 = vmatprep.subr.mxu0 %v194
    %1411 = vmatpush1.msra.mxu0 %v193
    %1412 = vmatprep.subr.mxu0 %v162
    %1413 = vmatpush1.msra.mxu0 %v161
    %1414 = vmatprep.subr.mxu0 %v130
    %1415 = vmatpush1.msra.mxu0 %v129
    %1416 = vmatprep.subr.mxu0 %v98
    %1417 = vmatpush1.msra.mxu0 %v97
    %1418 = vmatprep.subr.mxu0 0.0
    %1419 = vmatpush2.msra.mxu0 0.0
    %1420 = vmatprep.subr.mxu0 0.0
    %1421 = vmatpush2.msra.mxu0 0.0
    %1422 = vmatprep.subr.mxu0 0.0
    %1423 = vmatpush2.msra.mxu0 0.0
    %1424 = vmatprep.subr.mxu0 0.0
    %1425 = vmatpush2.msra.mxu0 0.0
    %1426 = vmatprep.subr.mxu0 0.0
    %1427 = vmatpush2.msra.mxu0 0.0
    %1428 = vmatprep.subr.mxu0 0.0
    %1429 = vmatpush2.msra.mxu0 0.0
    %1430 = vmatprep.subr.mxu0 0.0
    %1431 = vmatpush2.msra.mxu0 0.0
    %1432 = vmatprep.subr.mxu0 0.0
    %1433 = vmatpush2.msra.mxu0 0.0
    %1434 = vmatprep.subr.mxu0 0.0
    %1435 = vmatpush2.msra.mxu0 0.0
    %1436 = vmatprep.subr.mxu0 0.0
    %1437 = vmatpush2.msra.mxu0 0.0
    %1438 = vmatprep.subr.mxu0 0.0
    %1439 = vmatpush2.msra.mxu0 0.0
    %1440 = vmatprep.subr.mxu0 0.0
    %1441 = vmatpush2.msra.mxu0 0.0
    %1442 = vmatprep.subr.mxu0 0.0
    %1443 = vmatpush2.msra.mxu0 0.0
    %1444 = vmatprep.subr.mxu0 0.0
    %1445 = vmatpush2.msra.mxu0 0.0
    %1446 = vmatprep.subr.mxu0 0.0
    %1447 = vmatpush2.msra.mxu0 0.0
    %1448 = vmatprep.subr.mxu0 0.0
    %1449 = vmatpush2.msra.mxu0 0.0
    %1450 = vmatprep.mubr.f32.mxu0 0.0
    %1451 = vmatmul.mubr.f32.gmra.mxu0 %v435
    %v1452 = vpop.f32.mrf.mxu0
    %v1453 = vadd.f32 %v372, %v1452
    %v1454 = vpop.f32.mrf.mxu0
    %v1455 = vadd.f32 %v376, %v1454
    %1456 = vdwg.mxu0
    %1457 = vmatprep.subr.mxu0 0.0
    %1458 = vmatpush1.msra.mxu0 0.0
    %1459 = vmatprep.subr.mxu0 0.0
    %1460 = vmatpush1.msra.mxu0 0.0
    %1461 = vmatprep.subr.mxu0 0.0
    %1462 = vmatpush1.msra.mxu0 0.0
    %1463 = vmatprep.subr.mxu0 0.0
    %1464 = vmatpush1.msra.mxu0 0.0
    %1465 = vmatprep.subr.mxu0 0.0
    %1466 = vmatpush1.msra.mxu0 0.0
    %1467 = vmatprep.subr.mxu0 0.0
    %1468 = vmatpush1.msra.mxu0 0.0
    %1469 = vmatprep.subr.mxu0 0.0
    %1470 = vmatpush1.msra.mxu0 0.0
    %1471 = vmatprep.subr.mxu0 0.0
    %1472 = vmatpush1.msra.mxu0 0.0
    %1473 = vmatprep.subr.mxu0 0.0
    %1474 = vmatpush1.msra.mxu0 0.0
    %1475 = vmatprep.subr.mxu0 0.0
    %1476 = vmatpush1.msra.mxu0 0.0
    %1477 = vmatprep.subr.mxu0 %v520
    %1478 = vmatpush1.msra.mxu0 %v517
    %1479 = vmatprep.subr.mxu0 %v228
    %1480 = vmatpush1.msra.mxu0 %v227
    %1481 = vmatprep.subr.mxu0 %v196
    %1482 = vmatpush1.msra.mxu0 %v195
    %1483 = vmatprep.subr.mxu0 %v164
    %1484 = vmatpush1.msra.mxu0 %v163
    %1485 = vmatprep.subr.mxu0 %v132
    %1486 = vmatpush1.msra.mxu0 %v131
    %1487 = vmatprep.subr.mxu0 %v100
    %1488 = vmatpush1.msra.mxu0 %v99
    %1489 = vmatprep.subr.mxu0 0.0
    %1490 = vmatpush2.msra.mxu0 0.0
    %1491 = vmatprep.subr.mxu0 0.0
    %1492 = vmatpush2.msra.mxu0 0.0
    %1493 = vmatprep.subr.mxu0 0.0
    %1494 = vmatpush2.msra.mxu0 0.0
    %1495 = vmatprep.subr.mxu0 0.0
    %1496 = vmatpush2.msra.mxu0 0.0
    %1497 = vmatprep.subr.mxu0 0.0
    %1498 = vmatpush2.msra.mxu0 0.0
    %1499 = vmatprep.subr.mxu0 0.0
    %1500 = vmatpush2.msra.mxu0 0.0
    %1501 = vmatprep.subr.mxu0 0.0
    %1502 = vmatpush2.msra.mxu0 0.0
    %1503 = vmatprep.subr.mxu0 0.0
    %1504 = vmatpush2.msra.mxu0 0.0
    %1505 = vmatprep.subr.mxu0 0.0
    %1506 = vmatpush2.msra.mxu0 0.0
    %1507 = vmatprep.subr.mxu0 0.0
    %1508 = vmatpush2.msra.mxu0 0.0
    %1509 = vmatprep.subr.mxu0 0.0
    %1510 = vmatpush2.msra.mxu0 0.0
    %1511 = vmatprep.subr.mxu0 0.0
    %1512 = vmatpush2.msra.mxu0 0.0
    %1513 = vmatprep.subr.mxu0 0.0
    %1514 = vmatpush2.msra.mxu0 0.0
    %1515 = vmatprep.subr.mxu0 0.0
    %1516 = vmatpush2.msra.mxu0 0.0
    %1517 = vmatprep.subr.mxu0 0.0
    %1518 = vmatpush2.msra.mxu0 0.0
    %1519 = vmatprep.subr.mxu0 0.0
    %1520 = vmatpush2.msra.mxu0 0.0
    %1521 = vmatprep.mubr.f32.mxu0 0.0
    %1522 = vmatmul.mubr.f32.gmra.mxu0 %v435
    %v1523 = vpop.f32.mrf.mxu0
    %v1524 = vadd.f32 %v380, %v1523
    %v1525 = vpop.f32.mrf.mxu0
    %v1526 = vadd.f32 %v384, %v1525
    %1527 = vdwg.mxu0
    %1528 = vmatprep.subr.mxu0 0.0
    %1529 = vmatpush1.msra.mxu0 0.0
    %1530 = vmatprep.subr.mxu0 0.0
    %1531 = vmatpush1.msra.mxu0 0.0
    %1532 = vmatprep.subr.mxu0 0.0
    %1533 = vmatpush1.msra.mxu0 0.0
    %1534 = vmatprep.subr.mxu0 0.0
    %1535 = vmatpush1.msra.mxu0 0.0
    %1536 = vmatprep.subr.mxu0 0.0
    %1537 = vmatpush1.msra.mxu0 0.0
    %1538 = vmatprep.subr.mxu0 0.0
    %1539 = vmatpush1.msra.mxu0 0.0
    %1540 = vmatprep.subr.mxu0 0.0
    %1541 = vmatpush1.msra.mxu0 0.0
    %1542 = vmatprep.subr.mxu0 0.0
    %1543 = vmatpush1.msra.mxu0 0.0
    %1544 = vmatprep.subr.mxu0 0.0
    %1545 = vmatpush1.msra.mxu0 0.0
    %1546 = vmatprep.subr.mxu0 0.0
    %1547 = vmatpush1.msra.mxu0 0.0
    %1548 = vmatprep.subr.mxu0 %v526
    %1549 = vmatpush1.msra.mxu0 %v523
    %1550 = vmatprep.subr.mxu0 %v230
    %1551 = vmatpush1.msra.mxu0 %v229
    %1552 = vmatprep.subr.mxu0 %v198
    %1553 = vmatpush1.msra.mxu0 %v197
    %1554 = vmatprep.subr.mxu0 %v166
    %1555 = vmatpush1.msra.mxu0 %v165
    %1556 = vmatprep.subr.mxu0 %v134
    %1557 = vmatpush1.msra.mxu0 %v133
    %1558 = vmatprep.subr.mxu0 %v102
    %1559 = vmatpush1.msra.mxu0 %v101
    %1560 = vmatprep.subr.mxu0 0.0
    %1561 = vmatpush2.msra.mxu0 0.0
    %1562 = vmatprep.subr.mxu0 0.0
    %1563 = vmatpush2.msra.mxu0 0.0
    %1564 = vmatprep.subr.mxu0 0.0
    %1565 = vmatpush2.msra.mxu0 0.0
    %1566 = vmatprep.subr.mxu0 0.0
    %1567 = vmatpush2.msra.mxu0 0.0
    %1568 = vmatprep.subr.mxu0 0.0
    %1569 = vmatpush2.msra.mxu0 0.0
    %1570 = vmatprep.subr.mxu0 0.0
    %1571 = vmatpush2.msra.mxu0 0.0
    %1572 = vmatprep.subr.mxu0 0.0
    %1573 = vmatpush2.msra.mxu0 0.0
    %1574 = vmatprep.subr.mxu0 0.0
    %1575 = vmatpush2.msra.mxu0 0.0
    %1576 = vmatprep.subr.mxu0 0.0
    %1577 = vmatpush2.msra.mxu0 0.0
    %1578 = vmatprep.subr.mxu0 0.0
    %1579 = vmatpush2.msra.mxu0 0.0
    %1580 = vmatprep.subr.mxu0 0.0
    %1581 = vmatpush2.msra.mxu0 0.0
    %1582 = vmatprep.subr.mxu0 0.0
    %1583 = vmatpush2.msra.mxu0 0.0
    %1584 = vmatprep.subr.mxu0 0.0
    %1585 = vmatpush2.msra.mxu0 0.0
    %1586 = vmatprep.subr.mxu0 0.0
    %1587 = vmatpush2.msra.mxu0 0.0
    %1588 = vmatprep.subr.mxu0 0.0
    %1589 = vmatpush2.msra.mxu0 0.0
    %1590 = vmatprep.subr.mxu0 0.0
    %1591 = vmatpush2.msra.mxu0 0.0
    %1592 = vmatprep.mubr.f32.mxu0 0.0
    %1593 = vmatmul.mubr.f32.gmra.mxu0 %v435
    %v1594 = vpop.f32.mrf.mxu0
    %v1595 = vadd.f32 %v388, %v1594
    %v1596 = vpop.f32.mrf.mxu0
    %v1597 = vadd.f32 %v392, %v1596
    %1598 = vdwg.mxu0
    %1599 = vmatprep.subr.mxu0 0.0
    %1600 = vmatpush1.msra.mxu0 0.0
    %1601 = vmatprep.subr.mxu0 0.0
    %1602 = vmatpush1.msra.mxu0 0.0
    %1603 = vmatprep.subr.mxu0 0.0
    %1604 = vmatpush1.msra.mxu0 0.0
    %1605 = vmatprep.subr.mxu0 0.0
    %1606 = vmatpush1.msra.mxu0 0.0
    %1607 = vmatprep.subr.mxu0 0.0
    %1608 = vmatpush1.msra.mxu0 0.0
    %1609 = vmatprep.subr.mxu0 0.0
    %1610 = vmatpush1.msra.mxu0 0.0
    %1611 = vmatprep.subr.mxu0 0.0
    %1612 = vmatpush1.msra.mxu0 0.0
    %1613 = vmatprep.subr.mxu0 0.0
    %1614 = vmatpush1.msra.mxu0 0.0
    %1615 = vmatprep.subr.mxu0 0.0
    %1616 = vmatpush1.msra.mxu0 0.0
    %1617 = vmatprep.subr.mxu0 0.0
    %1618 = vmatpush1.msra.mxu0 0.0
    %1619 = vmatprep.subr.mxu0 %v532
    %1620 = vmatpush1.msra.mxu0 %v529
    %1621 = vmatprep.subr.mxu0 %v232
    %1622 = vmatpush1.msra.mxu0 %v231
    %1623 = vmatprep.subr.mxu0 %v200
    %1624 = vmatpush1.msra.mxu0 %v199
    %1625 = vmatprep.subr.mxu0 %v168
    %1626 = vmatpush1.msra.mxu0 %v167
    %1627 = vmatprep.subr.mxu0 %v136
    %1628 = vmatpush1.msra.mxu0 %v135
    %1629 = vmatprep.subr.mxu0 %v104
    %1630 = vmatpush1.msra.mxu0 %v103
    %1631 = vmatprep.subr.mxu0 0.0
    %1632 = vmatpush2.msra.mxu0 0.0
    %1633 = vmatprep.subr.mxu0 0.0
    %1634 = vmatpush2.msra.mxu0 0.0
    %1635 = vmatprep.subr.mxu0 0.0
    %1636 = vmatpush2.msra.mxu0 0.0
    %1637 = vmatprep.subr.mxu0 0.0
    %1638 = vmatpush2.msra.mxu0 0.0
    %1639 = vmatprep.subr.mxu0 0.0
    %1640 = vmatpush2.msra.mxu0 0.0
    %1641 = vmatprep.subr.mxu0 0.0
    %1642 = vmatpush2.msra.mxu0 0.0
    %1643 = vmatprep.subr.mxu0 0.0
    %1644 = vmatpush2.msra.mxu0 0.0
    %1645 = vmatprep.subr.mxu0 0.0
    %1646 = vmatpush2.msra.mxu0 0.0
    %1647 = vmatprep.subr.mxu0 0.0
    %1648 = vmatpush2.msra.mxu0 0.0
    %1649 = vmatprep.subr.mxu0 0.0
    %1650 = vmatpush2.msra.mxu0 0.0
    %1651 = vmatprep.subr.mxu0 0.0
    %1652 = vmatpush2.msra.mxu0 0.0
    %1653 = vmatprep.subr.mxu0 0.0
    %1654 = vmatpush2.msra.mxu0 0.0
    %1655 = vmatprep.subr.mxu0 0.0
    %1656 = vmatpush2.msra.mxu0 0.0
    %1657 = vmatprep.subr.mxu0 0.0
    %1658 = vmatpush2.msra.mxu0 0.0
    %1659 = vmatprep.subr.mxu0 0.0
    %1660 = vmatpush2.msra.mxu0 0.0
    %1661 = vmatprep.subr.mxu0 0.0
    %1662 = vmatpush2.msra.mxu0 0.0
    %1663 = vmatprep.mubr.f32.mxu0 0.0
    %1664 = vmatmul.mubr.f32.gmra.mxu0 %v435
    %v1665 = vpop.f32.mrf.mxu0
    %v1666 = vadd.f32 %v396, %v1665
    %v1667 = vpop.f32.mrf.mxu0
    %v1668 = vadd.f32 %v400, %v1667
    %1669 = vdwg.mxu0
    %v1670 = vmax.f32 %v601, 0.0
    %v1671 = vmax.f32 %v603, 0.0
    %v1672 = vmax.f32 %v672, 0.0
    %v1673 = vmax.f32 %v674, 0.0
    %v1674 = vmax.f32 %v743, 0.0
    %v1675 = vmax.f32 %v745, 0.0
    %v1676 = vmax.f32 %v814, 0.0
    %v1677 = vmax.f32 %v816, 0.0
    %v1678 = vmax.f32 %v885, 0.0
    %v1679 = vmax.f32 %v887, 0.0
    %v1680 = vmax.f32 %v956, 0.0
    %v1681 = vmax.f32 %v958, 0.0
    %v1682 = vmax.f32 %v1027, 0.0
    %v1683 = vmax.f32 %v1029, 0.0
    %v1684 = vmax.f32 %v1098, 0.0
    %v1685 = vmax.f32 %v1100, 0.0
    %v1686 = vmax.f32 %v1169, 0.0
    %v1687 = vmax.f32 %v1171, 0.0
    %v1688 = vmax.f32 %v1240, 0.0
    %v1689 = vmax.f32 %v1242, 0.0
    %v1690 = vmax.f32 %v1311, 0.0
    %v1691 = vmax.f32 %v1313, 0.0
    %v1692 = vmax.f32 %v1382, 0.0
    %v1693 = vmax.f32 %v1384, 0.0
    %v1694 = vmax.f32 %v1453, 0.0
    %v1695 = vmax.f32 %v1455, 0.0
    %v1696 = vmax.f32 %v1524, 0.0
    %v1697 = vmax.f32 %v1526, 0.0
    %v1698 = vmax.f32 %v1595, 0.0
    %v1699 = vmax.f32 %v1597, 0.0
    %v1700 = vmax.f32 %v1666, 0.0
    %v1701 = vmax.f32 %v1668, 0.0
    %v1702 = vld [vmem:[#allocation8] sm:$0xff]
    %v1703 = vld [vmem:[#allocation8 + $0x8] sm:$0xff]
    %v1704 = vld [vmem:[#allocation8 + $0x10] sm:$0xff]
    %v1705 = vld [vmem:[#allocation8 + $0x18] sm:$0xff]
    %v1706 = vld [vmem:[#allocation8 + $0x20] sm:$0xff]
    %v1707 = vld [vmem:[#allocation8 + $0x28] sm:$0xff]
    %v1708 = vld [vmem:[#allocation8 + $0x30] sm:$0xff]
    %v1709 = vld [vmem:[#allocation8 + $0x38] sm:$0xff]
    %v1710 = vld [vmem:[#allocation8 + $0x40] sm:$0xff]
    %v1711 = vld [vmem:[#allocation8 + $0x48] sm:$0xff]
    %v1712 = vld [vmem:[#allocation8 + $0x50] sm:$0xff]
    %v1713 = vld [vmem:[#allocation8 + $0x58] sm:$0xff]
    %v1714 = vld [vmem:[#allocation8 + $0x60] sm:$0xff]
    %v1715 = vld [vmem:[#allocation8 + $0x68] sm:$0xff]
    %v1716 = vld [vmem:[#allocation8 + $0x70] sm:$0xff]
    %v1717 = vld [vmem:[#allocation8 + $0x78] sm:$0xff]
    %v1718 = vld [vmem:[#allocation8 + $0x80] sm:$0xff]
    %v1719 = vld [vmem:[#allocation8 + $0x88] sm:$0xff]
    %v1720 = vld [vmem:[#allocation8 + $0x90] sm:$0xff]
    %v1721 = vld [vmem:[#allocation8 + $0x98] sm:$0xff]
    %v1722 = vld [vmem:[#allocation8 + $0xa0] sm:$0xff]
    %v1723 = vld [vmem:[#allocation8 + $0xa8] sm:$0xff]
    %v1724 = vld [vmem:[#allocation8 + $0xb0] sm:$0xff]
    %v1725 = vld [vmem:[#allocation8 + $0xb8] sm:$0xff]
    %v1726 = vld [vmem:[#allocation8 + $0xc0] sm:$0xff]
    %v1727 = vld [vmem:[#allocation8 + $0xc8] sm:$0xff]
    %v1728 = vld [vmem:[#allocation8 + $0xd0] sm:$0xff]
    %v1729 = vld [vmem:[#allocation8 + $0xd8] sm:$0xff]
    %v1730 = vld [vmem:[#allocation8 + $0xe0] sm:$0xff]
    %v1731 = vld [vmem:[#allocation8 + $0xe8] sm:$0xff]
    %v1732 = vld [vmem:[#allocation8 + $0xf0] sm:$0xff]
    %v1733 = vld [vmem:[#allocation8 + $0xf8] sm:$0xff]
    %v1734 = vld [vmem:[#allocation8 + $0x100] sm:$0xff]
    %v1735 = vld [vmem:[#allocation8 + $0x108] sm:$0xff]
    %v1736 = vld [vmem:[#allocation8 + $0x110] sm:$0xff]
    %v1737 = vld [vmem:[#allocation8 + $0x118] sm:$0xff]
    %v1738 = vld [vmem:[#allocation8 + $0x120] sm:$0xff]
    %v1739 = vld [vmem:[#allocation8 + $0x128] sm:$0xff]
    %v1740 = vld [vmem:[#allocation8 + $0x130] sm:$0xff]
    %v1741 = vld [vmem:[#allocation8 + $0x138] sm:$0xff]
    %v1742 = vld [vmem:[#allocation8 + $0x140] sm:$0xff]
    %v1743 = vld [vmem:[#allocation8 + $0x148] sm:$0xff]
    %v1744 = vld [vmem:[#allocation8 + $0x150] sm:$0xff]
    %v1745 = vld [vmem:[#allocation8 + $0x158] sm:$0xff]
    %v1746 = vld [vmem:[#allocation8 + $0x160] sm:$0xff]
    %v1747 = vld [vmem:[#allocation8 + $0x168] sm:$0xff]
    %v1748 = vld [vmem:[#allocation8 + $0x170] sm:$0xff]
    %v1749 = vld [vmem:[#allocation8 + $0x178] sm:$0xff]
    %v1750 = vld [vmem:[#allocation8 + $0x180] sm:$0xff]
    %v1751 = vld [vmem:[#allocation8 + $0x188] sm:$0xff]
    %v1752 = vld [vmem:[#allocation8 + $0x190] sm:$0xff]
    %v1753 = vld [vmem:[#allocation8 + $0x198] sm:$0xff]
    %v1754 = vld [vmem:[#allocation8 + $0x1a0] sm:$0xff]
    %v1755 = vld [vmem:[#allocation8 + $0x1a8] sm:$0xff]
    %v1756 = vld [vmem:[#allocation8 + $0x1b0] sm:$0xff]
    %v1757 = vld [vmem:[#allocation8 + $0x1b8] sm:$0xff]
    %v1758 = vld [vmem:[#allocation8 + $0x1c0] sm:$0xff]
    %v1759 = vld [vmem:[#allocation8 + $0x1c8] sm:$0xff]
    %v1760 = vld [vmem:[#allocation8 + $0x1d0] sm:$0xff]
    %v1761 = vld [vmem:[#allocation8 + $0x1d8] sm:$0xff]
    %v1762 = vld [vmem:[#allocation8 + $0x1e0] sm:$0xff]
    %v1763 = vld [vmem:[#allocation8 + $0x1e8] sm:$0xff]
    %v1764 = vld [vmem:[#allocation8 + $0x1f0] sm:$0xff]
    %v1765 = vld [vmem:[#allocation8 + $0x1f8] sm:$0xff]
    %v1766 = vld [vmem:[%s4] sm:$0x1]
    %v1768 = vlaneseq
    %v1769 = vshrl.u32 %v1768, 7
    %v1770 = vsub.s32 0, %v1769
    %v1771 = vrot.slane %v1766, %v1770
    %1773 = vmatprep.subr.mxu0 0.0
    %1774 = vmatpush1.xpose.msra.mxu0 0.0
    %1775 = vmatprep.subr.mxu0 0.0
    %1776 = vmatpush1.xpose.msra.mxu0 0.0
    %1777 = vmatprep.subr.mxu0 0.0
    %1778 = vmatpush1.xpose.msra.mxu0 0.0
    %1779 = vmatprep.subr.mxu0 0.0
    %1780 = vmatpush1.xpose.msra.mxu0 0.0
    %1781 = vmatprep.subr.mxu0 0.0
    %1782 = vmatpush1.xpose.msra.mxu0 0.0
    %1783 = vmatprep.subr.mxu0 0.0
    %1784 = vmatpush1.xpose.msra.mxu0 0.0
    %1785 = vmatprep.subr.mxu0 0.0
    %1786 = vmatpush1.xpose.msra.mxu0 0.0
    %1787 = vmatprep.subr.mxu0 0.0
    %1788 = vmatpush1.xpose.msra.mxu0 0.0
    %1789 = vmatprep.subr.mxu0 0.0
    %1790 = vmatpush1.xpose.msra.mxu0 0.0
    %1791 = vmatprep.subr.mxu0 0.0
    %1792 = vmatpush1.xpose.msra.mxu0 0.0
    %1793 = vmatprep.subr.mxu0 0.0
    %1794 = vmatpush1.xpose.msra.mxu0 0.0
    %1795 = vmatprep.subr.mxu0 0.0
    %1796 = vmatpush1.xpose.msra.mxu0 0.0
    %1797 = vmatprep.subr.mxu0 0.0
    %1798 = vmatpush1.xpose.msra.mxu0 0.0
    %1799 = vmatprep.subr.mxu0 0.0
    %1800 = vmatpush1.xpose.msra.mxu0 0.0
    %1801 = vmatprep.subr.mxu0 %v1735
    %1802 = vmatpush1.xpose.msra.mxu0 %v1734
    %1803 = vmatprep.subr.mxu0 %v1703
    %1804 = vmatpush1.xpose.msra.mxu0 %v1702
    %1805 = vmatprep.subr.mxu0 0.0
    %1806 = vmatpush2.xpose.msra.mxu0 0.0
    %1807 = vmatprep.subr.mxu0 0.0
    %1808 = vmatpush2.xpose.msra.mxu0 0.0
    %1809 = vmatprep.subr.mxu0 0.0
    %1810 = vmatpush2.xpose.msra.mxu0 0.0
    %1811 = vmatprep.subr.mxu0 0.0
    %1812 = vmatpush2.xpose.msra.mxu0 0.0
    %1813 = vmatprep.subr.mxu0 0.0
    %1814 = vmatpush2.xpose.msra.mxu0 0.0
    %1815 = vmatprep.subr.mxu0 0.0
    %1816 = vmatpush2.xpose.msra.mxu0 0.0
    %1817 = vmatprep.subr.mxu0 0.0
    %1818 = vmatpush2.xpose.msra.mxu0 0.0
    %1819 = vmatprep.subr.mxu0 0.0
    %1820 = vmatpush2.xpose.msra.mxu0 0.0
    %1821 = vmatprep.subr.mxu0 0.0
    %1822 = vmatpush2.xpose.msra.mxu0 0.0
    %1823 = vmatprep.subr.mxu0 0.0
    %1824 = vmatpush2.xpose.msra.mxu0 0.0
    %1825 = vmatprep.subr.mxu0 0.0
    %1826 = vmatpush2.xpose.msra.mxu0 0.0
    %1827 = vmatprep.subr.mxu0 0.0
    %1828 = vmatpush2.xpose.msra.mxu0 0.0
    %1829 = vmatprep.subr.mxu0 0.0
    %1830 = vmatpush2.xpose.msra.mxu0 0.0
    %1831 = vmatprep.subr.mxu0 0.0
    %1832 = vmatpush2.xpose.msra.mxu0 0.0
    %1833 = vmatprep.subr.mxu0 0.0
    %1834 = vmatpush2.xpose.msra.mxu0 0.0
    %1835 = vmatprep.subr.mxu0 0.0
    %1836 = vmatpush2.xpose.msra.mxu0 0.0
    %1837 = vmatprep.mubr.f32.mxu0 %v1671
    %1838 = vmatmul.mubr.f32.gmra.mxu0 %v1670
    %v1839 = vpop.f32.mrf.mxu0
    %v1840 = vadd.f32 %v1771, %v1839
    %v1841 = vpop.f32.mrf.mxu0
    %1842 = vdwg.mxu0
    %1843 = vmatprep.subr.mxu0 0.0
    %1844 = vmatpush1.xpose.msra.mxu0 0.0
    %1845 = vmatprep.subr.mxu0 0.0
    %1846 = vmatpush1.xpose.msra.mxu0 0.0
    %1847 = vmatprep.subr.mxu0 0.0
    %1848 = vmatpush1.xpose.msra.mxu0 0.0
    %1849 = vmatprep.subr.mxu0 0.0
    %1850 = vmatpush1.xpose.msra.mxu0 0.0
    %1851 = vmatprep.subr.mxu0 0.0
    %1852 = vmatpush1.xpose.msra.mxu0 0.0
    %1853 = vmatprep.subr.mxu0 0.0
    %1854 = vmatpush1.xpose.msra.mxu0 0.0
    %1855 = vmatprep.subr.mxu0 0.0
    %1856 = vmatpush1.xpose.msra.mxu0 0.0
    %1857 = vmatprep.subr.mxu0 0.0
    %1858 = vmatpush1.xpose.msra.mxu0 0.0
    %1859 = vmatprep.subr.mxu0 0.0
    %1860 = vmatpush1.xpose.msra.mxu0 0.0
    %1861 = vmatprep.subr.mxu0 0.0
    %1862 = vmatpush1.xpose.msra.mxu0 0.0
    %1863 = vmatprep.subr.mxu0 0.0
    %1864 = vmatpush1.xpose.msra.mxu0 0.0
    %1865 = vmatprep.subr.mxu0 0.0
    %1866 = vmatpush1.xpose.msra.mxu0 0.0
    %1867 = vmatprep.subr.mxu0 0.0
    %1868 = vmatpush1.xpose.msra.mxu0 0.0
    %1869 = vmatprep.subr.mxu0 0.0
    %1870 = vmatpush1.xpose.msra.mxu0 0.0
    %1871 = vmatprep.subr.mxu0 %v1737
    %1872 = vmatpush1.xpose.msra.mxu0 %v1736
    %1873 = vmatprep.subr.mxu0 %v1705
    %1874 = vmatpush1.xpose.msra.mxu0 %v1704
    %1875 = vmatprep.subr.mxu0 0.0
    %1876 = vmatpush2.xpose.msra.mxu0 0.0
    %1877 = vmatprep.subr.mxu0 0.0
    %1878 = vmatpush2.xpose.msra.mxu0 0.0
    %1879 = vmatprep.subr.mxu0 0.0
    %1880 = vmatpush2.xpose.msra.mxu0 0.0
    %1881 = vmatprep.subr.mxu0 0.0
    %1882 = vmatpush2.xpose.msra.mxu0 0.0
    %1883 = vmatprep.subr.mxu0 0.0
    %1884 = vmatpush2.xpose.msra.mxu0 0.0
    %1885 = vmatprep.subr.mxu0 0.0
    %1886 = vmatpush2.xpose.msra.mxu0 0.0
    %1887 = vmatprep.subr.mxu0 0.0
    %1888 = vmatpush2.xpose.msra.mxu0 0.0
    %1889 = vmatprep.subr.mxu0 0.0
    %1890 = vmatpush2.xpose.msra.mxu0 0.0
    %1891 = vmatprep.subr.mxu0 0.0
    %1892 = vmatpush2.xpose.msra.mxu0 0.0
    %1893 = vmatprep.subr.mxu0 0.0
    %1894 = vmatpush2.xpose.msra.mxu0 0.0
    %1895 = vmatprep.subr.mxu0 0.0
    %1896 = vmatpush2.xpose.msra.mxu0 0.0
    %1897 = vmatprep.subr.mxu0 0.0
    %1898 = vmatpush2.xpose.msra.mxu0 0.0
    %1899 = vmatprep.subr.mxu0 0.0
    %1900 = vmatpush2.xpose.msra.mxu0 0.0
    %1901 = vmatprep.subr.mxu0 0.0
    %1902 = vmatpush2.xpose.msra.mxu0 0.0
    %1903 = vmatprep.subr.mxu0 0.0
    %1904 = vmatpush2.xpose.msra.mxu0 0.0
    %1905 = vmatprep.subr.mxu0 0.0
    %1906 = vmatpush2.xpose.msra.mxu0 0.0
    %1907 = vmatprep.mubr.f32.mxu0 %v1673
    %1908 = vmatmul.mubr.f32.gmra.mxu0 %v1672
    %v1909 = vpop.f32.mrf.mxu0
    %v1910 = vadd.f32 %v1840, %v1909
    %v1911 = vpop.f32.mrf.mxu0
    %1912 = vdwg.mxu0
    %1913 = vmatprep.subr.mxu0 0.0
    %1914 = vmatpush1.xpose.msra.mxu0 0.0
    %1915 = vmatprep.subr.mxu0 0.0
    %1916 = vmatpush1.xpose.msra.mxu0 0.0
    %1917 = vmatprep.subr.mxu0 0.0
    %1918 = vmatpush1.xpose.msra.mxu0 0.0
    %1919 = vmatprep.subr.mxu0 0.0
    %1920 = vmatpush1.xpose.msra.mxu0 0.0
    %1921 = vmatprep.subr.mxu0 0.0
    %1922 = vmatpush1.xpose.msra.mxu0 0.0
    %1923 = vmatprep.subr.mxu0 0.0
    %1924 = vmatpush1.xpose.msra.mxu0 0.0
    %1925 = vmatprep.subr.mxu0 0.0
    %1926 = vmatpush1.xpose.msra.mxu0 0.0
    %1927 = vmatprep.subr.mxu0 0.0
    %1928 = vmatpush1.xpose.msra.mxu0 0.0
    %1929 = vmatprep.subr.mxu0 0.0
    %1930 = vmatpush1.xpose.msra.mxu0 0.0
    %1931 = vmatprep.subr.mxu0 0.0
    %1932 = vmatpush1.xpose.msra.mxu0 0.0
    %1933 = vmatprep.subr.mxu0 0.0
    %1934 = vmatpush1.xpose.msra.mxu0 0.0
    %1935 = vmatprep.subr.mxu0 0.0
    %1936 = vmatpush1.xpose.msra.mxu0 0.0
    %1937 = vmatprep.subr.mxu0 0.0
    %1938 = vmatpush1.xpose.msra.mxu0 0.0
    %1939 = vmatprep.subr.mxu0 0.0
    %1940 = vmatpush1.xpose.msra.mxu0 0.0
    %1941 = vmatprep.subr.mxu0 %v1739
    %1942 = vmatpush1.xpose.msra.mxu0 %v1738
    %1943 = vmatprep.subr.mxu0 %v1707
    %1944 = vmatpush1.xpose.msra.mxu0 %v1706
    %1945 = vmatprep.subr.mxu0 0.0
    %1946 = vmatpush2.xpose.msra.mxu0 0.0
    %1947 = vmatprep.subr.mxu0 0.0
    %1948 = vmatpush2.xpose.msra.mxu0 0.0
    %1949 = vmatprep.subr.mxu0 0.0
    %1950 = vmatpush2.xpose.msra.mxu0 0.0
    %1951 = vmatprep.subr.mxu0 0.0
    %1952 = vmatpush2.xpose.msra.mxu0 0.0
    %1953 = vmatprep.subr.mxu0 0.0
    %1954 = vmatpush2.xpose.msra.mxu0 0.0
    %1955 = vmatprep.subr.mxu0 0.0
    %1956 = vmatpush2.xpose.msra.mxu0 0.0
    %1957 = vmatprep.subr.mxu0 0.0
    %1958 = vmatpush2.xpose.msra.mxu0 0.0
    %1959 = vmatprep.subr.mxu0 0.0
    %1960 = vmatpush2.xpose.msra.mxu0 0.0
    %1961 = vmatprep.subr.mxu0 0.0
    %1962 = vmatpush2.xpose.msra.mxu0 0.0
    %1963 = vmatprep.subr.mxu0 0.0
    %1964 = vmatpush2.xpose.msra.mxu0 0.0
    %1965 = vmatprep.subr.mxu0 0.0
    %1966 = vmatpush2.xpose.msra.mxu0 0.0
    %1967 = vmatprep.subr.mxu0 0.0
    %1968 = vmatpush2.xpose.msra.mxu0 0.0
    %1969 = vmatprep.subr.mxu0 0.0
    %1970 = vmatpush2.xpose.msra.mxu0 0.0
    %1971 = vmatprep.subr.mxu0 0.0
    %1972 = vmatpush2.xpose.msra.mxu0 0.0
    %1973 = vmatprep.subr.mxu0 0.0
    %1974 = vmatpush2.xpose.msra.mxu0 0.0
    %1975 = vmatprep.subr.mxu0 0.0
    %1976 = vmatpush2.xpose.msra.mxu0 0.0
    %1977 = vmatprep.mubr.f32.mxu0 %v1675
    %1978 = vmatmul.mubr.f32.gmra.mxu0 %v1674
    %v1979 = vpop.f32.mrf.mxu0
    %v1980 = vadd.f32 %v1910, %v1979
    %v1981 = vpop.f32.mrf.mxu0
    %1982 = vdwg.mxu0
    %1983 = vmatprep.subr.mxu0 0.0
    %1984 = vmatpush1.xpose.msra.mxu0 0.0
    %1985 = vmatprep.subr.mxu0 0.0
    %1986 = vmatpush1.xpose.msra.mxu0 0.0
    %1987 = vmatprep.subr.mxu0 0.0
    %1988 = vmatpush1.xpose.msra.mxu0 0.0
    %1989 = vmatprep.subr.mxu0 0.0
    %1990 = vmatpush1.xpose.msra.mxu0 0.0
    %1991 = vmatprep.subr.mxu0 0.0
    %1992 = vmatpush1.xpose.msra.mxu0 0.0
    %1993 = vmatprep.subr.mxu0 0.0
    %1994 = vmatpush1.xpose.msra.mxu0 0.0
    %1995 = vmatprep.subr.mxu0 0.0
    %1996 = vmatpush1.xpose.msra.mxu0 0.0
    %1997 = vmatprep.subr.mxu0 0.0
    %1998 = vmatpush1.xpose.msra.mxu0 0.0
    %1999 = vmatprep.subr.mxu0 0.0
    %2000 = vmatpush1.xpose.msra.mxu0 0.0
    %2001 = vmatprep.subr.mxu0 0.0
    %2002 = vmatpush1.xpose.msra.mxu0 0.0
    %2003 = vmatprep.subr.mxu0 0.0
    %2004 = vmatpush1.xpose.msra.mxu0 0.0
    %2005 = vmatprep.subr.mxu0 0.0
    %2006 = vmatpush1.xpose.msra.mxu0 0.0
    %2007 = vmatprep.subr.mxu0 0.0
    %2008 = vmatpush1.xpose.msra.mxu0 0.0
    %2009 = vmatprep.subr.mxu0 0.0
    %2010 = vmatpush1.xpose.msra.mxu0 0.0
    %2011 = vmatprep.subr.mxu0 %v1741
    %2012 = vmatpush1.xpose.msra.mxu0 %v1740
    %2013 = vmatprep.subr.mxu0 %v1709
    %2014 = vmatpush1.xpose.msra.mxu0 %v1708
    %2015 = vmatprep.subr.mxu0 0.0
    %2016 = vmatpush2.xpose.msra.mxu0 0.0
    %2017 = vmatprep.subr.mxu0 0.0
    %2018 = vmatpush2.xpose.msra.mxu0 0.0
    %2019 = vmatprep.subr.mxu0 0.0
    %2020 = vmatpush2.xpose.msra.mxu0 0.0
    %2021 = vmatprep.subr.mxu0 0.0
    %2022 = vmatpush2.xpose.msra.mxu0 0.0
    %2023 = vmatprep.subr.mxu0 0.0
    %2024 = vmatpush2.xpose.msra.mxu0 0.0
    %2025 = vmatprep.subr.mxu0 0.0
    %2026 = vmatpush2.xpose.msra.mxu0 0.0
    %2027 = vmatprep.subr.mxu0 0.0
    %2028 = vmatpush2.xpose.msra.mxu0 0.0
    %2029 = vmatprep.subr.mxu0 0.0
    %2030 = vmatpush2.xpose.msra.mxu0 0.0
    %2031 = vmatprep.subr.mxu0 0.0
    %2032 = vmatpush2.xpose.msra.mxu0 0.0
    %2033 = vmatprep.subr.mxu0 0.0
    %2034 = vmatpush2.xpose.msra.mxu0 0.0
    %2035 = vmatprep.subr.mxu0 0.0
    %2036 = vmatpush2.xpose.msra.mxu0 0.0
    %2037 = vmatprep.subr.mxu0 0.0
    %2038 = vmatpush2.xpose.msra.mxu0 0.0
    %2039 = vmatprep.subr.mxu0 0.0
    %2040 = vmatpush2.xpose.msra.mxu0 0.0
    %2041 = vmatprep.subr.mxu0 0.0
    %2042 = vmatpush2.xpose.msra.mxu0 0.0
    %2043 = vmatprep.subr.mxu0 0.0
    %2044 = vmatpush2.xpose.msra.mxu0 0.0
    %2045 = vmatprep.subr.mxu0 0.0
    %2046 = vmatpush2.xpose.msra.mxu0 0.0
    %2047 = vmatprep.mubr.f32.mxu0 %v1677
    %2048 = vmatmul.mubr.f32.gmra.mxu0 %v1676
    %v2049 = vpop.f32.mrf.mxu0
    %v2050 = vadd.f32 %v1980, %v2049
    %v2051 = vpop.f32.mrf.mxu0
    %2052 = vdwg.mxu0
    %2053 = vmatprep.subr.mxu0 0.0
    %2054 = vmatpush1.xpose.msra.mxu0 0.0
    %2055 = vmatprep.subr.mxu0 0.0
    %2056 = vmatpush1.xpose.msra.mxu0 0.0
    %2057 = vmatprep.subr.mxu0 0.0
    %2058 = vmatpush1.xpose.msra.mxu0 0.0
    %2059 = vmatprep.subr.mxu0 0.0
    %2060 = vmatpush1.xpose.msra.mxu0 0.0
    %2061 = vmatprep.subr.mxu0 0.0
    %2062 = vmatpush1.xpose.msra.mxu0 0.0
    %2063 = vmatprep.subr.mxu0 0.0
    %2064 = vmatpush1.xpose.msra.mxu0 0.0
    %2065 = vmatprep.subr.mxu0 0.0
    %2066 = vmatpush1.xpose.msra.mxu0 0.0
    %2067 = vmatprep.subr.mxu0 0.0
    %2068 = vmatpush1.xpose.msra.mxu0 0.0
    %2069 = vmatprep.subr.mxu0 0.0
    %2070 = vmatpush1.xpose.msra.mxu0 0.0
    %2071 = vmatprep.subr.mxu0 0.0
    %2072 = vmatpush1.xpose.msra.mxu0 0.0
    %2073 = vmatprep.subr.mxu0 0.0
    %2074 = vmatpush1.xpose.msra.mxu0 0.0
    %2075 = vmatprep.subr.mxu0 0.0
    %2076 = vmatpush1.xpose.msra.mxu0 0.0
    %2077 = vmatprep.subr.mxu0 0.0
    %2078 = vmatpush1.xpose.msra.mxu0 0.0
    %2079 = vmatprep.subr.mxu0 0.0
    %2080 = vmatpush1.xpose.msra.mxu0 0.0
    %2081 = vmatprep.subr.mxu0 %v1743
    %2082 = vmatpush1.xpose.msra.mxu0 %v1742
    %2083 = vmatprep.subr.mxu0 %v1711
    %2084 = vmatpush1.xpose.msra.mxu0 %v1710
    %2085 = vmatprep.subr.mxu0 0.0
    %2086 = vmatpush2.xpose.msra.mxu0 0.0
    %2087 = vmatprep.subr.mxu0 0.0
    %2088 = vmatpush2.xpose.msra.mxu0 0.0
    %2089 = vmatprep.subr.mxu0 0.0
    %2090 = vmatpush2.xpose.msra.mxu0 0.0
    %2091 = vmatprep.subr.mxu0 0.0
    %2092 = vmatpush2.xpose.msra.mxu0 0.0
    %2093 = vmatprep.subr.mxu0 0.0
    %2094 = vmatpush2.xpose.msra.mxu0 0.0
    %2095 = vmatprep.subr.mxu0 0.0
    %2096 = vmatpush2.xpose.msra.mxu0 0.0
    %2097 = vmatprep.subr.mxu0 0.0
    %2098 = vmatpush2.xpose.msra.mxu0 0.0
    %2099 = vmatprep.subr.mxu0 0.0
    %2100 = vmatpush2.xpose.msra.mxu0 0.0
    %2101 = vmatprep.subr.mxu0 0.0
    %2102 = vmatpush2.xpose.msra.mxu0 0.0
    %2103 = vmatprep.subr.mxu0 0.0
    %2104 = vmatpush2.xpose.msra.mxu0 0.0
    %2105 = vmatprep.subr.mxu0 0.0
    %2106 = vmatpush2.xpose.msra.mxu0 0.0
    %2107 = vmatprep.subr.mxu0 0.0
    %2108 = vmatpush2.xpose.msra.mxu0 0.0
    %2109 = vmatprep.subr.mxu0 0.0
    %2110 = vmatpush2.xpose.msra.mxu0 0.0
    %2111 = vmatprep.subr.mxu0 0.0
    %2112 = vmatpush2.xpose.msra.mxu0 0.0
    %2113 = vmatprep.subr.mxu0 0.0
    %2114 = vmatpush2.xpose.msra.mxu0 0.0
    %2115 = vmatprep.subr.mxu0 0.0
    %2116 = vmatpush2.xpose.msra.mxu0 0.0
    %2117 = vmatprep.mubr.f32.mxu0 %v1679
    %2118 = vmatmul.mubr.f32.gmra.mxu0 %v1678
    %v2119 = vpop.f32.mrf.mxu0
    %v2120 = vadd.f32 %v2050, %v2119
    %v2121 = vpop.f32.mrf.mxu0
    %2122 = vdwg.mxu0
    %2123 = vmatprep.subr.mxu0 0.0
    %2124 = vmatpush1.xpose.msra.mxu0 0.0
    %2125 = vmatprep.subr.mxu0 0.0
    %2126 = vmatpush1.xpose.msra.mxu0 0.0
    %2127 = vmatprep.subr.mxu0 0.0
    %2128 = vmatpush1.xpose.msra.mxu0 0.0
    %2129 = vmatprep.subr.mxu0 0.0
    %2130 = vmatpush1.xpose.msra.mxu0 0.0
    %2131 = vmatprep.subr.mxu0 0.0
    %2132 = vmatpush1.xpose.msra.mxu0 0.0
    %2133 = vmatprep.subr.mxu0 0.0
    %2134 = vmatpush1.xpose.msra.mxu0 0.0
    %2135 = vmatprep.subr.mxu0 0.0
    %2136 = vmatpush1.xpose.msra.mxu0 0.0
    %2137 = vmatprep.subr.mxu0 0.0
    %2138 = vmatpush1.xpose.msra.mxu0 0.0
    %2139 = vmatprep.subr.mxu0 0.0
    %2140 = vmatpush1.xpose.msra.mxu0 0.0
    %2141 = vmatprep.subr.mxu0 0.0
    %2142 = vmatpush1.xpose.msra.mxu0 0.0
    %2143 = vmatprep.subr.mxu0 0.0
    %2144 = vmatpush1.xpose.msra.mxu0 0.0
    %2145 = vmatprep.subr.mxu0 0.0
    %2146 = vmatpush1.xpose.msra.mxu0 0.0
    %2147 = vmatprep.subr.mxu0 0.0
    %2148 = vmatpush1.xpose.msra.mxu0 0.0
    %2149 = vmatprep.subr.mxu0 0.0
    %2150 = vmatpush1.xpose.msra.mxu0 0.0
    %2151 = vmatprep.subr.mxu0 %v1745
    %2152 = vmatpush1.xpose.msra.mxu0 %v1744
    %2153 = vmatprep.subr.mxu0 %v1713
    %2154 = vmatpush1.xpose.msra.mxu0 %v1712
    %2155 = vmatprep.subr.mxu0 0.0
    %2156 = vmatpush2.xpose.msra.mxu0 0.0
    %2157 = vmatprep.subr.mxu0 0.0
    %2158 = vmatpush2.xpose.msra.mxu0 0.0
    %2159 = vmatprep.subr.mxu0 0.0
    %2160 = vmatpush2.xpose.msra.mxu0 0.0
    %2161 = vmatprep.subr.mxu0 0.0
    %2162 = vmatpush2.xpose.msra.mxu0 0.0
    %2163 = vmatprep.subr.mxu0 0.0
    %2164 = vmatpush2.xpose.msra.mxu0 0.0
    %2165 = vmatprep.subr.mxu0 0.0
    %2166 = vmatpush2.xpose.msra.mxu0 0.0
    %2167 = vmatprep.subr.mxu0 0.0
    %2168 = vmatpush2.xpose.msra.mxu0 0.0
    %2169 = vmatprep.subr.mxu0 0.0
    %2170 = vmatpush2.xpose.msra.mxu0 0.0
    %2171 = vmatprep.subr.mxu0 0.0
    %2172 = vmatpush2.xpose.msra.mxu0 0.0
    %2173 = vmatprep.subr.mxu0 0.0
    %2174 = vmatpush2.xpose.msra.mxu0 0.0
    %2175 = vmatprep.subr.mxu0 0.0
    %2176 = vmatpush2.xpose.msra.mxu0 0.0
    %2177 = vmatprep.subr.mxu0 0.0
    %2178 = vmatpush2.xpose.msra.mxu0 0.0
    %2179 = vmatprep.subr.mxu0 0.0
    %2180 = vmatpush2.xpose.msra.mxu0 0.0
    %2181 = vmatprep.subr.mxu0 0.0
    %2182 = vmatpush2.xpose.msra.mxu0 0.0
    %2183 = vmatprep.subr.mxu0 0.0
    %2184 = vmatpush2.xpose.msra.mxu0 0.0
    %2185 = vmatprep.subr.mxu0 0.0
    %2186 = vmatpush2.xpose.msra.mxu0 0.0
    %2187 = vmatprep.mubr.f32.mxu0 %v1681
    %2188 = vmatmul.mubr.f32.gmra.mxu0 %v1680
    %v2189 = vpop.f32.mrf.mxu0
    %v2190 = vadd.f32 %v2120, %v2189
    %v2191 = vpop.f32.mrf.mxu0
    %2192 = vdwg.mxu0
    %2193 = vmatprep.subr.mxu0 0.0
    %2194 = vmatpush1.xpose.msra.mxu0 0.0
    %2195 = vmatprep.subr.mxu0 0.0
    %2196 = vmatpush1.xpose.msra.mxu0 0.0
    %2197 = vmatprep.subr.mxu0 0.0
    %2198 = vmatpush1.xpose.msra.mxu0 0.0
    %2199 = vmatprep.subr.mxu0 0.0
    %2200 = vmatpush1.xpose.msra.mxu0 0.0
    %2201 = vmatprep.subr.mxu0 0.0
    %2202 = vmatpush1.xpose.msra.mxu0 0.0
    %2203 = vmatprep.subr.mxu0 0.0
    %2204 = vmatpush1.xpose.msra.mxu0 0.0
    %2205 = vmatprep.subr.mxu0 0.0
    %2206 = vmatpush1.xpose.msra.mxu0 0.0
    %2207 = vmatprep.subr.mxu0 0.0
    %2208 = vmatpush1.xpose.msra.mxu0 0.0
    %2209 = vmatprep.subr.mxu0 0.0
    %2210 = vmatpush1.xpose.msra.mxu0 0.0
    %2211 = vmatprep.subr.mxu0 0.0
    %2212 = vmatpush1.xpose.msra.mxu0 0.0
    %2213 = vmatprep.subr.mxu0 0.0
    %2214 = vmatpush1.xpose.msra.mxu0 0.0
    %2215 = vmatprep.subr.mxu0 0.0
    %2216 = vmatpush1.xpose.msra.mxu0 0.0
    %2217 = vmatprep.subr.mxu0 0.0
    %2218 = vmatpush1.xpose.msra.mxu0 0.0
    %2219 = vmatprep.subr.mxu0 0.0
    %2220 = vmatpush1.xpose.msra.mxu0 0.0
    %2221 = vmatprep.subr.mxu0 %v1747
    %2222 = vmatpush1.xpose.msra.mxu0 %v1746
    %2223 = vmatprep.subr.mxu0 %v1715
    %2224 = vmatpush1.xpose.msra.mxu0 %v1714
    %2225 = vmatprep.subr.mxu0 0.0
    %2226 = vmatpush2.xpose.msra.mxu0 0.0
    %2227 = vmatprep.subr.mxu0 0.0
    %2228 = vmatpush2.xpose.msra.mxu0 0.0
    %2229 = vmatprep.subr.mxu0 0.0
    %2230 = vmatpush2.xpose.msra.mxu0 0.0
    %2231 = vmatprep.subr.mxu0 0.0
    %2232 = vmatpush2.xpose.msra.mxu0 0.0
    %2233 = vmatprep.subr.mxu0 0.0
    %2234 = vmatpush2.xpose.msra.mxu0 0.0
    %2235 = vmatprep.subr.mxu0 0.0
    %2236 = vmatpush2.xpose.msra.mxu0 0.0
    %2237 = vmatprep.subr.mxu0 0.0
    %2238 = vmatpush2.xpose.msra.mxu0 0.0
    %2239 = vmatprep.subr.mxu0 0.0
    %2240 = vmatpush2.xpose.msra.mxu0 0.0
    %2241 = vmatprep.subr.mxu0 0.0
    %2242 = vmatpush2.xpose.msra.mxu0 0.0
    %2243 = vmatprep.subr.mxu0 0.0
    %2244 = vmatpush2.xpose.msra.mxu0 0.0
    %2245 = vmatprep.subr.mxu0 0.0
    %2246 = vmatpush2.xpose.msra.mxu0 0.0
    %2247 = vmatprep.subr.mxu0 0.0
    %2248 = vmatpush2.xpose.msra.mxu0 0.0
    %2249 = vmatprep.subr.mxu0 0.0
    %2250 = vmatpush2.xpose.msra.mxu0 0.0
    %2251 = vmatprep.subr.mxu0 0.0
    %2252 = vmatpush2.xpose.msra.mxu0 0.0
    %2253 = vmatprep.subr.mxu0 0.0
    %2254 = vmatpush2.xpose.msra.mxu0 0.0
    %2255 = vmatprep.subr.mxu0 0.0
    %2256 = vmatpush2.xpose.msra.mxu0 0.0
    %2257 = vmatprep.mubr.f32.mxu0 %v1683
    %2258 = vmatmul.mubr.f32.gmra.mxu0 %v1682
    %v2259 = vpop.f32.mrf.mxu0
    %v2260 = vadd.f32 %v2190, %v2259
    %v2261 = vpop.f32.mrf.mxu0
    %2262 = vdwg.mxu0
    %2263 = vmatprep.subr.mxu0 0.0
    %2264 = vmatpush1.xpose.msra.mxu0 0.0
    %2265 = vmatprep.subr.mxu0 0.0
    %2266 = vmatpush1.xpose.msra.mxu0 0.0
    %2267 = vmatprep.subr.mxu0 0.0
    %2268 = vmatpush1.xpose.msra.mxu0 0.0
    %2269 = vmatprep.subr.mxu0 0.0
    %2270 = vmatpush1.xpose.msra.mxu0 0.0
    %2271 = vmatprep.subr.mxu0 0.0
    %2272 = vmatpush1.xpose.msra.mxu0 0.0
    %2273 = vmatprep.subr.mxu0 0.0
    %2274 = vmatpush1.xpose.msra.mxu0 0.0
    %2275 = vmatprep.subr.mxu0 0.0
    %2276 = vmatpush1.xpose.msra.mxu0 0.0
    %2277 = vmatprep.subr.mxu0 0.0
    %2278 = vmatpush1.xpose.msra.mxu0 0.0
    %2279 = vmatprep.subr.mxu0 0.0
    %2280 = vmatpush1.xpose.msra.mxu0 0.0
    %2281 = vmatprep.subr.mxu0 0.0
    %2282 = vmatpush1.xpose.msra.mxu0 0.0
    %2283 = vmatprep.subr.mxu0 0.0
    %2284 = vmatpush1.xpose.msra.mxu0 0.0
    %2285 = vmatprep.subr.mxu0 0.0
    %2286 = vmatpush1.xpose.msra.mxu0 0.0
    %2287 = vmatprep.subr.mxu0 0.0
    %2288 = vmatpush1.xpose.msra.mxu0 0.0
    %2289 = vmatprep.subr.mxu0 0.0
    %2290 = vmatpush1.xpose.msra.mxu0 0.0
    %2291 = vmatprep.subr.mxu0 %v1749
    %2292 = vmatpush1.xpose.msra.mxu0 %v1748
    %2293 = vmatprep.subr.mxu0 %v1717
    %2294 = vmatpush1.xpose.msra.mxu0 %v1716
    %2295 = vmatprep.subr.mxu0 0.0
    %2296 = vmatpush2.xpose.msra.mxu0 0.0
    %2297 = vmatprep.subr.mxu0 0.0
    %2298 = vmatpush2.xpose.msra.mxu0 0.0
    %2299 = vmatprep.subr.mxu0 0.0
    %2300 = vmatpush2.xpose.msra.mxu0 0.0
    %2301 = vmatprep.subr.mxu0 0.0
    %2302 = vmatpush2.xpose.msra.mxu0 0.0
    %2303 = vmatprep.subr.mxu0 0.0
    %2304 = vmatpush2.xpose.msra.mxu0 0.0
    %2305 = vmatprep.subr.mxu0 0.0
    %2306 = vmatpush2.xpose.msra.mxu0 0.0
    %2307 = vmatprep.subr.mxu0 0.0
    %2308 = vmatpush2.xpose.msra.mxu0 0.0
    %2309 = vmatprep.subr.mxu0 0.0
    %2310 = vmatpush2.xpose.msra.mxu0 0.0
    %2311 = vmatprep.subr.mxu0 0.0
    %2312 = vmatpush2.xpose.msra.mxu0 0.0
    %2313 = vmatprep.subr.mxu0 0.0
    %2314 = vmatpush2.xpose.msra.mxu0 0.0
    %2315 = vmatprep.subr.mxu0 0.0
    %2316 = vmatpush2.xpose.msra.mxu0 0.0
    %2317 = vmatprep.subr.mxu0 0.0
    %2318 = vmatpush2.xpose.msra.mxu0 0.0
    %2319 = vmatprep.subr.mxu0 0.0
    %2320 = vmatpush2.xpose.msra.mxu0 0.0
    %2321 = vmatprep.subr.mxu0 0.0
    %2322 = vmatpush2.xpose.msra.mxu0 0.0
    %2323 = vmatprep.subr.mxu0 0.0
    %2324 = vmatpush2.xpose.msra.mxu0 0.0
    %2325 = vmatprep.subr.mxu0 0.0
    %2326 = vmatpush2.xpose.msra.mxu0 0.0
    %2327 = vmatprep.mubr.f32.mxu0 %v1685
    %2328 = vmatmul.mubr.f32.gmra.mxu0 %v1684
    %v2329 = vpop.f32.mrf.mxu0
    %v2330 = vadd.f32 %v2260, %v2329
    %v2331 = vpop.f32.mrf.mxu0
    %2332 = vdwg.mxu0
    %2333 = vmatprep.subr.mxu0 0.0
    %2334 = vmatpush1.xpose.msra.mxu0 0.0
    %2335 = vmatprep.subr.mxu0 0.0
    %2336 = vmatpush1.xpose.msra.mxu0 0.0
    %2337 = vmatprep.subr.mxu0 0.0
    %2338 = vmatpush1.xpose.msra.mxu0 0.0
    %2339 = vmatprep.subr.mxu0 0.0
    %2340 = vmatpush1.xpose.msra.mxu0 0.0
    %2341 = vmatprep.subr.mxu0 0.0
    %2342 = vmatpush1.xpose.msra.mxu0 0.0
    %2343 = vmatprep.subr.mxu0 0.0
    %2344 = vmatpush1.xpose.msra.mxu0 0.0
    %2345 = vmatprep.subr.mxu0 0.0
    %2346 = vmatpush1.xpose.msra.mxu0 0.0
    %2347 = vmatprep.subr.mxu0 0.0
    %2348 = vmatpush1.xpose.msra.mxu0 0.0
    %2349 = vmatprep.subr.mxu0 0.0
    %2350 = vmatpush1.xpose.msra.mxu0 0.0
    %2351 = vmatprep.subr.mxu0 0.0
    %2352 = vmatpush1.xpose.msra.mxu0 0.0
    %2353 = vmatprep.subr.mxu0 0.0
    %2354 = vmatpush1.xpose.msra.mxu0 0.0
    %2355 = vmatprep.subr.mxu0 0.0
    %2356 = vmatpush1.xpose.msra.mxu0 0.0
    %2357 = vmatprep.subr.mxu0 0.0
    %2358 = vmatpush1.xpose.msra.mxu0 0.0
    %2359 = vmatprep.subr.mxu0 0.0
    %2360 = vmatpush1.xpose.msra.mxu0 0.0
    %2361 = vmatprep.subr.mxu0 %v1751
    %2362 = vmatpush1.xpose.msra.mxu0 %v1750
    %2363 = vmatprep.subr.mxu0 %v1719
    %2364 = vmatpush1.xpose.msra.mxu0 %v1718
    %2365 = vmatprep.subr.mxu0 0.0
    %2366 = vmatpush2.xpose.msra.mxu0 0.0
    %2367 = vmatprep.subr.mxu0 0.0
    %2368 = vmatpush2.xpose.msra.mxu0 0.0
    %2369 = vmatprep.subr.mxu0 0.0
    %2370 = vmatpush2.xpose.msra.mxu0 0.0
    %2371 = vmatprep.subr.mxu0 0.0
    %2372 = vmatpush2.xpose.msra.mxu0 0.0
    %2373 = vmatprep.subr.mxu0 0.0
    %2374 = vmatpush2.xpose.msra.mxu0 0.0
    %2375 = vmatprep.subr.mxu0 0.0
    %2376 = vmatpush2.xpose.msra.mxu0 0.0
    %2377 = vmatprep.subr.mxu0 0.0
    %2378 = vmatpush2.xpose.msra.mxu0 0.0
    %2379 = vmatprep.subr.mxu0 0.0
    %2380 = vmatpush2.xpose.msra.mxu0 0.0
    %2381 = vmatprep.subr.mxu0 0.0
    %2382 = vmatpush2.xpose.msra.mxu0 0.0
    %2383 = vmatprep.subr.mxu0 0.0
    %2384 = vmatpush2.xpose.msra.mxu0 0.0
    %2385 = vmatprep.subr.mxu0 0.0
    %2386 = vmatpush2.xpose.msra.mxu0 0.0
    %2387 = vmatprep.subr.mxu0 0.0
    %2388 = vmatpush2.xpose.msra.mxu0 0.0
    %2389 = vmatprep.subr.mxu0 0.0
    %2390 = vmatpush2.xpose.msra.mxu0 0.0
    %2391 = vmatprep.subr.mxu0 0.0
    %2392 = vmatpush2.xpose.msra.mxu0 0.0
    %2393 = vmatprep.subr.mxu0 0.0
    %2394 = vmatpush2.xpose.msra.mxu0 0.0
    %2395 = vmatprep.subr.mxu0 0.0
    %2396 = vmatpush2.xpose.msra.mxu0 0.0
    %2397 = vmatprep.mubr.f32.mxu0 %v1687
    %2398 = vmatmul.mubr.f32.gmra.mxu0 %v1686
    %v2399 = vpop.f32.mrf.mxu0
    %v2400 = vadd.f32 %v2330, %v2399
    %v2401 = vpop.f32.mrf.mxu0
    %2402 = vdwg.mxu0
    %2403 = vmatprep.subr.mxu0 0.0
    %2404 = vmatpush1.xpose.msra.mxu0 0.0
    %2405 = vmatprep.subr.mxu0 0.0
    %2406 = vmatpush1.xpose.msra.mxu0 0.0
    %2407 = vmatprep.subr.mxu0 0.0
    %2408 = vmatpush1.xpose.msra.mxu0 0.0
    %2409 = vmatprep.subr.mxu0 0.0
    %2410 = vmatpush1.xpose.msra.mxu0 0.0
    %2411 = vmatprep.subr.mxu0 0.0
    %2412 = vmatpush1.xpose.msra.mxu0 0.0
    %2413 = vmatprep.subr.mxu0 0.0
    %2414 = vmatpush1.xpose.msra.mxu0 0.0
    %2415 = vmatprep.subr.mxu0 0.0
    %2416 = vmatpush1.xpose.msra.mxu0 0.0
    %2417 = vmatprep.subr.mxu0 0.0
    %2418 = vmatpush1.xpose.msra.mxu0 0.0
    %2419 = vmatprep.subr.mxu0 0.0
    %2420 = vmatpush1.xpose.msra.mxu0 0.0
    %2421 = vmatprep.subr.mxu0 0.0
    %2422 = vmatpush1.xpose.msra.mxu0 0.0
    %2423 = vmatprep.subr.mxu0 0.0
    %2424 = vmatpush1.xpose.msra.mxu0 0.0
    %2425 = vmatprep.subr.mxu0 0.0
    %2426 = vmatpush1.xpose.msra.mxu0 0.0
    %2427 = vmatprep.subr.mxu0 0.0
    %2428 = vmatpush1.xpose.msra.mxu0 0.0
    %2429 = vmatprep.subr.mxu0 0.0
    %2430 = vmatpush1.xpose.msra.mxu0 0.0
    %2431 = vmatprep.subr.mxu0 %v1753
    %2432 = vmatpush1.xpose.msra.mxu0 %v1752
    %2433 = vmatprep.subr.mxu0 %v1721
    %2434 = vmatpush1.xpose.msra.mxu0 %v1720
    %2435 = vmatprep.subr.mxu0 0.0
    %2436 = vmatpush2.xpose.msra.mxu0 0.0
    %2437 = vmatprep.subr.mxu0 0.0
    %2438 = vmatpush2.xpose.msra.mxu0 0.0
    %2439 = vmatprep.subr.mxu0 0.0
    %2440 = vmatpush2.xpose.msra.mxu0 0.0
    %2441 = vmatprep.subr.mxu0 0.0
    %2442 = vmatpush2.xpose.msra.mxu0 0.0
    %2443 = vmatprep.subr.mxu0 0.0
    %2444 = vmatpush2.xpose.msra.mxu0 0.0
    %2445 = vmatprep.subr.mxu0 0.0
    %2446 = vmatpush2.xpose.msra.mxu0 0.0
    %2447 = vmatprep.subr.mxu0 0.0
    %2448 = vmatpush2.xpose.msra.mxu0 0.0
    %2449 = vmatprep.subr.mxu0 0.0
    %2450 = vmatpush2.xpose.msra.mxu0 0.0
    %2451 = vmatprep.subr.mxu0 0.0
    %2452 = vmatpush2.xpose.msra.mxu0 0.0
    %2453 = vmatprep.subr.mxu0 0.0
    %2454 = vmatpush2.xpose.msra.mxu0 0.0
    %2455 = vmatprep.subr.mxu0 0.0
    %2456 = vmatpush2.xpose.msra.mxu0 0.0
    %2457 = vmatprep.subr.mxu0 0.0
    %2458 = vmatpush2.xpose.msra.mxu0 0.0
    %2459 = vmatprep.subr.mxu0 0.0
    %2460 = vmatpush2.xpose.msra.mxu0 0.0
    %2461 = vmatprep.subr.mxu0 0.0
    %2462 = vmatpush2.xpose.msra.mxu0 0.0
    %2463 = vmatprep.subr.mxu0 0.0
    %2464 = vmatpush2.xpose.msra.mxu0 0.0
    %2465 = vmatprep.subr.mxu0 0.0
    %2466 = vmatpush2.xpose.msra.mxu0 0.0
    %2467 = vmatprep.mubr.f32.mxu0 %v1689
    %2468 = vmatmul.mubr.f32.gmra.mxu0 %v1688
    %v2469 = vpop.f32.mrf.mxu0
    %v2470 = vadd.f32 %v2400, %v2469
    %v2471 = vpop.f32.mrf.mxu0
    %2472 = vdwg.mxu0
    %2473 = vmatprep.subr.mxu0 0.0
    %2474 = vmatpush1.xpose.msra.mxu0 0.0
    %2475 = vmatprep.subr.mxu0 0.0
    %2476 = vmatpush1.xpose.msra.mxu0 0.0
    %2477 = vmatprep.subr.mxu0 0.0
    %2478 = vmatpush1.xpose.msra.mxu0 0.0
    %2479 = vmatprep.subr.mxu0 0.0
    %2480 = vmatpush1.xpose.msra.mxu0 0.0
    %2481 = vmatprep.subr.mxu0 0.0
    %2482 = vmatpush1.xpose.msra.mxu0 0.0
    %2483 = vmatprep.subr.mxu0 0.0
    %2484 = vmatpush1.xpose.msra.mxu0 0.0
    %2485 = vmatprep.subr.mxu0 0.0
    %2486 = vmatpush1.xpose.msra.mxu0 0.0
    %2487 = vmatprep.subr.mxu0 0.0
    %2488 = vmatpush1.xpose.msra.mxu0 0.0
    %2489 = vmatprep.subr.mxu0 0.0
    %2490 = vmatpush1.xpose.msra.mxu0 0.0
    %2491 = vmatprep.subr.mxu0 0.0
    %2492 = vmatpush1.xpose.msra.mxu0 0.0
    %2493 = vmatprep.subr.mxu0 0.0
    %2494 = vmatpush1.xpose.msra.mxu0 0.0
    %2495 = vmatprep.subr.mxu0 0.0
    %2496 = vmatpush1.xpose.msra.mxu0 0.0
    %2497 = vmatprep.subr.mxu0 0.0
    %2498 = vmatpush1.xpose.msra.mxu0 0.0
    %2499 = vmatprep.subr.mxu0 0.0
    %2500 = vmatpush1.xpose.msra.mxu0 0.0
    %2501 = vmatprep.subr.mxu0 %v1755
    %2502 = vmatpush1.xpose.msra.mxu0 %v1754
    %2503 = vmatprep.subr.mxu0 %v1723
    %2504 = vmatpush1.xpose.msra.mxu0 %v1722
    %2505 = vmatprep.subr.mxu0 0.0
    %2506 = vmatpush2.xpose.msra.mxu0 0.0
    %2507 = vmatprep.subr.mxu0 0.0
    %2508 = vmatpush2.xpose.msra.mxu0 0.0
    %2509 = vmatprep.subr.mxu0 0.0
    %2510 = vmatpush2.xpose.msra.mxu0 0.0
    %2511 = vmatprep.subr.mxu0 0.0
    %2512 = vmatpush2.xpose.msra.mxu0 0.0
    %2513 = vmatprep.subr.mxu0 0.0
    %2514 = vmatpush2.xpose.msra.mxu0 0.0
    %2515 = vmatprep.subr.mxu0 0.0
    %2516 = vmatpush2.xpose.msra.mxu0 0.0
    %2517 = vmatprep.subr.mxu0 0.0
    %2518 = vmatpush2.xpose.msra.mxu0 0.0
    %2519 = vmatprep.subr.mxu0 0.0
    %2520 = vmatpush2.xpose.msra.mxu0 0.0
    %2521 = vmatprep.subr.mxu0 0.0
    %2522 = vmatpush2.xpose.msra.mxu0 0.0
    %2523 = vmatprep.subr.mxu0 0.0
    %2524 = vmatpush2.xpose.msra.mxu0 0.0
    %2525 = vmatprep.subr.mxu0 0.0
    %2526 = vmatpush2.xpose.msra.mxu0 0.0
    %2527 = vmatprep.subr.mxu0 0.0
    %2528 = vmatpush2.xpose.msra.mxu0 0.0
    %2529 = vmatprep.subr.mxu0 0.0
    %2530 = vmatpush2.xpose.msra.mxu0 0.0
    %2531 = vmatprep.subr.mxu0 0.0
    %2532 = vmatpush2.xpose.msra.mxu0 0.0
    %2533 = vmatprep.subr.mxu0 0.0
    %2534 = vmatpush2.xpose.msra.mxu0 0.0
    %2535 = vmatprep.subr.mxu0 0.0
    %2536 = vmatpush2.xpose.msra.mxu0 0.0
    %2537 = vmatprep.mubr.f32.mxu0 %v1691
    %2538 = vmatmul.mubr.f32.gmra.mxu0 %v1690
    %v2539 = vpop.f32.mrf.mxu0
    %v2540 = vadd.f32 %v2470, %v2539
    %v2541 = vpop.f32.mrf.mxu0
    %2542 = vdwg.mxu0
    %2543 = vmatprep.subr.mxu0 0.0
    %2544 = vmatpush1.xpose.msra.mxu0 0.0
    %2545 = vmatprep.subr.mxu0 0.0
    %2546 = vmatpush1.xpose.msra.mxu0 0.0
    %2547 = vmatprep.subr.mxu0 0.0
    %2548 = vmatpush1.xpose.msra.mxu0 0.0
    %2549 = vmatprep.subr.mxu0 0.0
    %2550 = vmatpush1.xpose.msra.mxu0 0.0
    %2551 = vmatprep.subr.mxu0 0.0
    %2552 = vmatpush1.xpose.msra.mxu0 0.0
    %2553 = vmatprep.subr.mxu0 0.0
    %2554 = vmatpush1.xpose.msra.mxu0 0.0
    %2555 = vmatprep.subr.mxu0 0.0
    %2556 = vmatpush1.xpose.msra.mxu0 0.0
    %2557 = vmatprep.subr.mxu0 0.0
    %2558 = vmatpush1.xpose.msra.mxu0 0.0
    %2559 = vmatprep.subr.mxu0 0.0
    %2560 = vmatpush1.xpose.msra.mxu0 0.0
    %2561 = vmatprep.subr.mxu0 0.0
    %2562 = vmatpush1.xpose.msra.mxu0 0.0
    %2563 = vmatprep.subr.mxu0 0.0
    %2564 = vmatpush1.xpose.msra.mxu0 0.0
    %2565 = vmatprep.subr.mxu0 0.0
    %2566 = vmatpush1.xpose.msra.mxu0 0.0
    %2567 = vmatprep.subr.mxu0 0.0
    %2568 = vmatpush1.xpose.msra.mxu0 0.0
    %2569 = vmatprep.subr.mxu0 0.0
    %2570 = vmatpush1.xpose.msra.mxu0 0.0
    %2571 = vmatprep.subr.mxu0 %v1757
    %2572 = vmatpush1.xpose.msra.mxu0 %v1756
    %2573 = vmatprep.subr.mxu0 %v1725
    %2574 = vmatpush1.xpose.msra.mxu0 %v1724
    %2575 = vmatprep.subr.mxu0 0.0
    %2576 = vmatpush2.xpose.msra.mxu0 0.0
    %2577 = vmatprep.subr.mxu0 0.0
    %2578 = vmatpush2.xpose.msra.mxu0 0.0
    %2579 = vmatprep.subr.mxu0 0.0
    %2580 = vmatpush2.xpose.msra.mxu0 0.0
    %2581 = vmatprep.subr.mxu0 0.0
    %2582 = vmatpush2.xpose.msra.mxu0 0.0
    %2583 = vmatprep.subr.mxu0 0.0
    %2584 = vmatpush2.xpose.msra.mxu0 0.0
    %2585 = vmatprep.subr.mxu0 0.0
    %2586 = vmatpush2.xpose.msra.mxu0 0.0
    %2587 = vmatprep.subr.mxu0 0.0
    %2588 = vmatpush2.xpose.msra.mxu0 0.0
    %2589 = vmatprep.subr.mxu0 0.0
    %2590 = vmatpush2.xpose.msra.mxu0 0.0
    %2591 = vmatprep.subr.mxu0 0.0
    %2592 = vmatpush2.xpose.msra.mxu0 0.0
    %2593 = vmatprep.subr.mxu0 0.0
    %2594 = vmatpush2.xpose.msra.mxu0 0.0
    %2595 = vmatprep.subr.mxu0 0.0
    %2596 = vmatpush2.xpose.msra.mxu0 0.0
    %2597 = vmatprep.subr.mxu0 0.0
    %2598 = vmatpush2.xpose.msra.mxu0 0.0
    %2599 = vmatprep.subr.mxu0 0.0
    %2600 = vmatpush2.xpose.msra.mxu0 0.0
    %2601 = vmatprep.subr.mxu0 0.0
    %2602 = vmatpush2.xpose.msra.mxu0 0.0
    %2603 = vmatprep.subr.mxu0 0.0
    %2604 = vmatpush2.xpose.msra.mxu0 0.0
    %2605 = vmatprep.subr.mxu0 0.0
    %2606 = vmatpush2.xpose.msra.mxu0 0.0
    %2607 = vmatprep.mubr.f32.mxu0 %v1693
    %2608 = vmatmul.mubr.f32.gmra.mxu0 %v1692
    %v2609 = vpop.f32.mrf.mxu0
    %v2610 = vadd.f32 %v2540, %v2609
    %v2611 = vpop.f32.mrf.mxu0
    %2612 = vdwg.mxu0
    %2613 = vmatprep.subr.mxu0 0.0
    %2614 = vmatpush1.xpose.msra.mxu0 0.0
    %2615 = vmatprep.subr.mxu0 0.0
    %2616 = vmatpush1.xpose.msra.mxu0 0.0
    %2617 = vmatprep.subr.mxu0 0.0
    %2618 = vmatpush1.xpose.msra.mxu0 0.0
    %2619 = vmatprep.subr.mxu0 0.0
    %2620 = vmatpush1.xpose.msra.mxu0 0.0
    %2621 = vmatprep.subr.mxu0 0.0
    %2622 = vmatpush1.xpose.msra.mxu0 0.0
    %2623 = vmatprep.subr.mxu0 0.0
    %2624 = vmatpush1.xpose.msra.mxu0 0.0
    %2625 = vmatprep.subr.mxu0 0.0
    %2626 = vmatpush1.xpose.msra.mxu0 0.0
    %2627 = vmatprep.subr.mxu0 0.0
    %2628 = vmatpush1.xpose.msra.mxu0 0.0
    %2629 = vmatprep.subr.mxu0 0.0
    %2630 = vmatpush1.xpose.msra.mxu0 0.0
    %2631 = vmatprep.subr.mxu0 0.0
    %2632 = vmatpush1.xpose.msra.mxu0 0.0
    %2633 = vmatprep.subr.mxu0 0.0
    %2634 = vmatpush1.xpose.msra.mxu0 0.0
    %2635 = vmatprep.subr.mxu0 0.0
    %2636 = vmatpush1.xpose.msra.mxu0 0.0
    %2637 = vmatprep.subr.mxu0 0.0
    %2638 = vmatpush1.xpose.msra.mxu0 0.0
    %2639 = vmatprep.subr.mxu0 0.0
    %2640 = vmatpush1.xpose.msra.mxu0 0.0
    %2641 = vmatprep.subr.mxu0 %v1759
    %2642 = vmatpush1.xpose.msra.mxu0 %v1758
    %2643 = vmatprep.subr.mxu0 %v1727
    %2644 = vmatpush1.xpose.msra.mxu0 %v1726
    %2645 = vmatprep.subr.mxu0 0.0
    %2646 = vmatpush2.xpose.msra.mxu0 0.0
    %2647 = vmatprep.subr.mxu0 0.0
    %2648 = vmatpush2.xpose.msra.mxu0 0.0
    %2649 = vmatprep.subr.mxu0 0.0
    %2650 = vmatpush2.xpose.msra.mxu0 0.0
    %2651 = vmatprep.subr.mxu0 0.0
    %2652 = vmatpush2.xpose.msra.mxu0 0.0
    %2653 = vmatprep.subr.mxu0 0.0
    %2654 = vmatpush2.xpose.msra.mxu0 0.0
    %2655 = vmatprep.subr.mxu0 0.0
    %2656 = vmatpush2.xpose.msra.mxu0 0.0
    %2657 = vmatprep.subr.mxu0 0.0
    %2658 = vmatpush2.xpose.msra.mxu0 0.0
    %2659 = vmatprep.subr.mxu0 0.0
    %2660 = vmatpush2.xpose.msra.mxu0 0.0
    %2661 = vmatprep.subr.mxu0 0.0
    %2662 = vmatpush2.xpose.msra.mxu0 0.0
    %2663 = vmatprep.subr.mxu0 0.0
    %2664 = vmatpush2.xpose.msra.mxu0 0.0
    %2665 = vmatprep.subr.mxu0 0.0
    %2666 = vmatpush2.xpose.msra.mxu0 0.0
    %2667 = vmatprep.subr.mxu0 0.0
    %2668 = vmatpush2.xpose.msra.mxu0 0.0
    %2669 = vmatprep.subr.mxu0 0.0
    %2670 = vmatpush2.xpose.msra.mxu0 0.0
    %2671 = vmatprep.subr.mxu0 0.0
    %2672 = vmatpush2.xpose.msra.mxu0 0.0
    %2673 = vmatprep.subr.mxu0 0.0
    %2674 = vmatpush2.xpose.msra.mxu0 0.0
    %2675 = vmatprep.subr.mxu0 0.0
    %2676 = vmatpush2.xpose.msra.mxu0 0.0
    %2677 = vmatprep.mubr.f32.mxu0 %v1695
    %2678 = vmatmul.mubr.f32.gmra.mxu0 %v1694
    %v2679 = vpop.f32.mrf.mxu0
    %v2680 = vadd.f32 %v2610, %v2679
    %v2681 = vpop.f32.mrf.mxu0
    %2682 = vdwg.mxu0
    %2683 = vmatprep.subr.mxu0 0.0
    %2684 = vmatpush1.xpose.msra.mxu0 0.0
    %2685 = vmatprep.subr.mxu0 0.0
    %2686 = vmatpush1.xpose.msra.mxu0 0.0
    %2687 = vmatprep.subr.mxu0 0.0
    %2688 = vmatpush1.xpose.msra.mxu0 0.0
    %2689 = vmatprep.subr.mxu0 0.0
    %2690 = vmatpush1.xpose.msra.mxu0 0.0
    %2691 = vmatprep.subr.mxu0 0.0
    %2692 = vmatpush1.xpose.msra.mxu0 0.0
    %2693 = vmatprep.subr.mxu0 0.0
    %2694 = vmatpush1.xpose.msra.mxu0 0.0
    %2695 = vmatprep.subr.mxu0 0.0
    %2696 = vmatpush1.xpose.msra.mxu0 0.0
    %2697 = vmatprep.subr.mxu0 0.0
    %2698 = vmatpush1.xpose.msra.mxu0 0.0
    %2699 = vmatprep.subr.mxu0 0.0
    %2700 = vmatpush1.xpose.msra.mxu0 0.0
    %2701 = vmatprep.subr.mxu0 0.0
    %2702 = vmatpush1.xpose.msra.mxu0 0.0
    %2703 = vmatprep.subr.mxu0 0.0
    %2704 = vmatpush1.xpose.msra.mxu0 0.0
    %2705 = vmatprep.subr.mxu0 0.0
    %2706 = vmatpush1.xpose.msra.mxu0 0.0
    %2707 = vmatprep.subr.mxu0 0.0
    %2708 = vmatpush1.xpose.msra.mxu0 0.0
    %2709 = vmatprep.subr.mxu0 0.0
    %2710 = vmatpush1.xpose.msra.mxu0 0.0
    %2711 = vmatprep.subr.mxu0 %v1761
    %2712 = vmatpush1.xpose.msra.mxu0 %v1760
    %2713 = vmatprep.subr.mxu0 %v1729
    %2714 = vmatpush1.xpose.msra.mxu0 %v1728
    %2715 = vmatprep.subr.mxu0 0.0
    %2716 = vmatpush2.xpose.msra.mxu0 0.0
    %2717 = vmatprep.subr.mxu0 0.0
    %2718 = vmatpush2.xpose.msra.mxu0 0.0
    %2719 = vmatprep.subr.mxu0 0.0
    %2720 = vmatpush2.xpose.msra.mxu0 0.0
    %2721 = vmatprep.subr.mxu0 0.0
    %2722 = vmatpush2.xpose.msra.mxu0 0.0
    %2723 = vmatprep.subr.mxu0 0.0
    %2724 = vmatpush2.xpose.msra.mxu0 0.0
    %2725 = vmatprep.subr.mxu0 0.0
    %2726 = vmatpush2.xpose.msra.mxu0 0.0
    %2727 = vmatprep.subr.mxu0 0.0
    %2728 = vmatpush2.xpose.msra.mxu0 0.0
    %2729 = vmatprep.subr.mxu0 0.0
    %2730 = vmatpush2.xpose.msra.mxu0 0.0
    %2731 = vmatprep.subr.mxu0 0.0
    %2732 = vmatpush2.xpose.msra.mxu0 0.0
    %2733 = vmatprep.subr.mxu0 0.0
    %2734 = vmatpush2.xpose.msra.mxu0 0.0
    %2735 = vmatprep.subr.mxu0 0.0
    %2736 = vmatpush2.xpose.msra.mxu0 0.0
    %2737 = vmatprep.subr.mxu0 0.0
    %2738 = vmatpush2.xpose.msra.mxu0 0.0
    %2739 = vmatprep.subr.mxu0 0.0
    %2740 = vmatpush2.xpose.msra.mxu0 0.0
    %2741 = vmatprep.subr.mxu0 0.0
    %2742 = vmatpush2.xpose.msra.mxu0 0.0
    %2743 = vmatprep.subr.mxu0 0.0
    %2744 = vmatpush2.xpose.msra.mxu0 0.0
    %2745 = vmatprep.subr.mxu0 0.0
    %2746 = vmatpush2.xpose.msra.mxu0 0.0
    %2747 = vmatprep.mubr.f32.mxu0 %v1697
    %2748 = vmatmul.mubr.f32.gmra.mxu0 %v1696
    %v2749 = vpop.f32.mrf.mxu0
    %v2750 = vadd.f32 %v2680, %v2749
    %v2751 = vpop.f32.mrf.mxu0
    %2752 = vdwg.mxu0
    %2753 = vmatprep.subr.mxu0 0.0
    %2754 = vmatpush1.xpose.msra.mxu0 0.0
    %2755 = vmatprep.subr.mxu0 0.0
    %2756 = vmatpush1.xpose.msra.mxu0 0.0
    %2757 = vmatprep.subr.mxu0 0.0
    %2758 = vmatpush1.xpose.msra.mxu0 0.0
    %2759 = vmatprep.subr.mxu0 0.0
    %2760 = vmatpush1.xpose.msra.mxu0 0.0
    %2761 = vmatprep.subr.mxu0 0.0
    %2762 = vmatpush1.xpose.msra.mxu0 0.0
    %2763 = vmatprep.subr.mxu0 0.0
    %2764 = vmatpush1.xpose.msra.mxu0 0.0
    %2765 = vmatprep.subr.mxu0 0.0
    %2766 = vmatpush1.xpose.msra.mxu0 0.0
    %2767 = vmatprep.subr.mxu0 0.0
    %2768 = vmatpush1.xpose.msra.mxu0 0.0
    %2769 = vmatprep.subr.mxu0 0.0
    %2770 = vmatpush1.xpose.msra.mxu0 0.0
    %2771 = vmatprep.subr.mxu0 0.0
    %2772 = vmatpush1.xpose.msra.mxu0 0.0
    %2773 = vmatprep.subr.mxu0 0.0
    %2774 = vmatpush1.xpose.msra.mxu0 0.0
    %2775 = vmatprep.subr.mxu0 0.0
    %2776 = vmatpush1.xpose.msra.mxu0 0.0
    %2777 = vmatprep.subr.mxu0 0.0
    %2778 = vmatpush1.xpose.msra.mxu0 0.0
    %2779 = vmatprep.subr.mxu0 0.0
    %2780 = vmatpush1.xpose.msra.mxu0 0.0
    %2781 = vmatprep.subr.mxu0 %v1763
    %2782 = vmatpush1.xpose.msra.mxu0 %v1762
    %2783 = vmatprep.subr.mxu0 %v1731
    %2784 = vmatpush1.xpose.msra.mxu0 %v1730
    %2785 = vmatprep.subr.mxu0 0.0
    %2786 = vmatpush2.xpose.msra.mxu0 0.0
    %2787 = vmatprep.subr.mxu0 0.0
    %2788 = vmatpush2.xpose.msra.mxu0 0.0
    %2789 = vmatprep.subr.mxu0 0.0
    %2790 = vmatpush2.xpose.msra.mxu0 0.0
    %2791 = vmatprep.subr.mxu0 0.0
    %2792 = vmatpush2.xpose.msra.mxu0 0.0
    %2793 = vmatprep.subr.mxu0 0.0
    %2794 = vmatpush2.xpose.msra.mxu0 0.0
    %2795 = vmatprep.subr.mxu0 0.0
    %2796 = vmatpush2.xpose.msra.mxu0 0.0
    %2797 = vmatprep.subr.mxu0 0.0
    %2798 = vmatpush2.xpose.msra.mxu0 0.0
    %2799 = vmatprep.subr.mxu0 0.0
    %2800 = vmatpush2.xpose.msra.mxu0 0.0
    %2801 = vmatprep.subr.mxu0 0.0
    %2802 = vmatpush2.xpose.msra.mxu0 0.0
    %2803 = vmatprep.subr.mxu0 0.0
    %2804 = vmatpush2.xpose.msra.mxu0 0.0
    %2805 = vmatprep.subr.mxu0 0.0
    %2806 = vmatpush2.xpose.msra.mxu0 0.0
    %2807 = vmatprep.subr.mxu0 0.0
    %2808 = vmatpush2.xpose.msra.mxu0 0.0
    %2809 = vmatprep.subr.mxu0 0.0
    %2810 = vmatpush2.xpose.msra.mxu0 0.0
    %2811 = vmatprep.subr.mxu0 0.0
    %2812 = vmatpush2.xpose.msra.mxu0 0.0
    %2813 = vmatprep.subr.mxu0 0.0
    %2814 = vmatpush2.xpose.msra.mxu0 0.0
    %2815 = vmatprep.subr.mxu0 0.0
    %2816 = vmatpush2.xpose.msra.mxu0 0.0
    %2817 = vmatprep.mubr.f32.mxu0 %v1699
    %2818 = vmatmul.mubr.f32.gmra.mxu0 %v1698
    %v2819 = vpop.f32.mrf.mxu0
    %v2820 = vadd.f32 %v2750, %v2819
    %v2821 = vpop.f32.mrf.mxu0
    %2822 = vdwg.mxu0
    %2823 = vmatprep.subr.mxu0 0.0
    %2824 = vmatpush1.xpose.msra.mxu0 0.0
    %2825 = vmatprep.subr.mxu0 0.0
    %2826 = vmatpush1.xpose.msra.mxu0 0.0
    %2827 = vmatprep.subr.mxu0 0.0
    %2828 = vmatpush1.xpose.msra.mxu0 0.0
    %2829 = vmatprep.subr.mxu0 0.0
    %2830 = vmatpush1.xpose.msra.mxu0 0.0
    %2831 = vmatprep.subr.mxu0 0.0
    %2832 = vmatpush1.xpose.msra.mxu0 0.0
    %2833 = vmatprep.subr.mxu0 0.0
    %2834 = vmatpush1.xpose.msra.mxu0 0.0
    %2835 = vmatprep.subr.mxu0 0.0
    %2836 = vmatpush1.xpose.msra.mxu0 0.0
    %2837 = vmatprep.subr.mxu0 0.0
    %2838 = vmatpush1.xpose.msra.mxu0 0.0
    %2839 = vmatprep.subr.mxu0 0.0
    %2840 = vmatpush1.xpose.msra.mxu0 0.0
    %2841 = vmatprep.subr.mxu0 0.0
    %2842 = vmatpush1.xpose.msra.mxu0 0.0
    %2843 = vmatprep.subr.mxu0 0.0
    %2844 = vmatpush1.xpose.msra.mxu0 0.0
    %2845 = vmatprep.subr.mxu0 0.0
    %2846 = vmatpush1.xpose.msra.mxu0 0.0
    %2847 = vmatprep.subr.mxu0 0.0
    %2848 = vmatpush1.xpose.msra.mxu0 0.0
    %2849 = vmatprep.subr.mxu0 0.0
    %2850 = vmatpush1.xpose.msra.mxu0 0.0
    %2851 = vmatprep.subr.mxu0 %v1765
    %2852 = vmatpush1.xpose.msra.mxu0 %v1764
    %2853 = vmatprep.subr.mxu0 %v1733
    %2854 = vmatpush1.xpose.msra.mxu0 %v1732
    %2855 = vmatprep.subr.mxu0 0.0
    %2856 = vmatpush2.xpose.msra.mxu0 0.0
    %2857 = vmatprep.subr.mxu0 0.0
    %2858 = vmatpush2.xpose.msra.mxu0 0.0
    %2859 = vmatprep.subr.mxu0 0.0
    %2860 = vmatpush2.xpose.msra.mxu0 0.0
    %2861 = vmatprep.subr.mxu0 0.0
    %2862 = vmatpush2.xpose.msra.mxu0 0.0
    %2863 = vmatprep.subr.mxu0 0.0
    %2864 = vmatpush2.xpose.msra.mxu0 0.0
    %2865 = vmatprep.subr.mxu0 0.0
    %2866 = vmatpush2.xpose.msra.mxu0 0.0
    %2867 = vmatprep.subr.mxu0 0.0
    %2868 = vmatpush2.xpose.msra.mxu0 0.0
    %2869 = vmatprep.subr.mxu0 0.0
    %2870 = vmatpush2.xpose.msra.mxu0 0.0
    %2871 = vmatprep.subr.mxu0 0.0
    %2872 = vmatpush2.xpose.msra.mxu0 0.0
    %2873 = vmatprep.subr.mxu0 0.0
    %2874 = vmatpush2.xpose.msra.mxu0 0.0
    %2875 = vmatprep.subr.mxu0 0.0
    %2876 = vmatpush2.xpose.msra.mxu0 0.0
    %2877 = vmatprep.subr.mxu0 0.0
    %2878 = vmatpush2.xpose.msra.mxu0 0.0
    %2879 = vmatprep.subr.mxu0 0.0
    %2880 = vmatpush2.xpose.msra.mxu0 0.0
    %2881 = vmatprep.subr.mxu0 0.0
    %2882 = vmatpush2.xpose.msra.mxu0 0.0
    %2883 = vmatprep.subr.mxu0 0.0
    %2884 = vmatpush2.xpose.msra.mxu0 0.0
    %2885 = vmatprep.subr.mxu0 0.0
    %2886 = vmatpush2.xpose.msra.mxu0 0.0
    %2887 = vmatprep.mubr.f32.mxu0 %v1701
    %2888 = vmatmul.mubr.f32.gmra.mxu0 %v1700
    %v2889 = vpop.f32.mrf.mxu0
    %v2890 = vadd.f32 %v2820, %v2889
    %v2891 = vpop.f32.mrf.mxu0
    %2892 = vdwg.mxu0
    %vm2893 = vcmask 123904
    %2894 = vst.msk [vmem:[#allocation10] sm:$0x3] %vm2893, %v2890
    // Predicated region
    $region38: #{forward.1} parent=1 // pred_check
      _
    $region39: #{forward.1} parent=1 // pred_check_branch
      %2896 = sbr.rel (0) target = $region41
    $region40: #{forward.1} parent=1 // pred_region
      %s2898 = ssub.s32 32, 32
      %2899 = vsyncadd [#allocation4], %s2898
      %s2901 = sshll.u32 [#allocation10], 4
      %s2902 = int_to_ptr.vmem [resolvable:$true] %s2901
      %2904 = dma.vmem_to_hbm [thread:$0]  %s2902, 32, %s5, [#allocation4]
    $region41: #{forward.1} parent=1 // pred_fallthru
      _
    // Predicated region
    $region42: #{forward.1} parent=1 // pred_check
      _
    $region43: #{forward.1} parent=1 // pred_check_branch
      %2906 = sbr.rel (0) target = $region45
    $region44: #{forward.1} parent=1 // pred_region
      %2907 = dma.done [#allocation4], 32
    $region45: #{forward.1} parent=1 // pred_fallthru
      _
    %2908 = vsyncpa [#allocation3], 1
    %2909 = vsyncpa [#allocation6], 1
    %2910 = vsyncpa [#allocation9], 1
    %2911 = vsyncpa [#allocation4], 1

</llo_original>
